<compile_context>
chip_gen: v7x
topology: tpu7x:2x2x1
jax: 0.10.0
libtpu: 0.0.40
codegen_flags: <defaults>
</compile_context>

<pallas_src>
import jax
import jax.numpy as jnp
from jax.experimental import pallas as pl
from jax.experimental.pallas import tpu as pltpu

CHANNELS = 64
R = 2
INTER = CHANNELS // R            # 32
W2_OFF = 3 * INTER               # row offset of the second-stage weights in the pack
BN_EPS = 1e-5


# --------------------------------- kernel ------------------------------------

def iaff_kernel(x_ref, r_ref, w_ref, b_ref, o_ref):
    # x_ref / r_ref / o_ref : [1, C, HW]   (HW on lanes, lane-dense)
    # w_ref : [3*INTER + 3*C, C] packed weights (row blocks):
    #   [0:INTER]                     Wl1  local_att  conv1 (BN1 folded)  [INTER, C]
    #   [INTER:2*INTER]               Wg1  global_att conv1               [INTER, C]
    #   [2*INTER:3*INTER]             Wm1  local_att2 conv1 (BN folded)   [INTER, C]
    #   [W2_OFF      :W2_OFF +  C, 0:INTER]  Wl2  local_att  conv2 (BN2 folded)
    #   [W2_OFF +  C :W2_OFF + 2C, 0:INTER]  Wm2  local_att2 conv2 (BN2 folded)
    #   [W2_OFF + 2C :W2_OFF + 3C, 0:INTER]  Wg2  global_att conv2
    # b_ref : [C, 8] packed biases (cols: 0 bl1, 1 bg1, 2 bm1, 3 bl2, 4 bm2, 5 bg2)
    x = x_ref[0]          # [C, HW]
    res = r_ref[0]        # [C, HW]

    Wl1 = w_ref[0 * INTER:1 * INTER, :]
    Wg1 = w_ref[1 * INTER:2 * INTER, :]
    Wm1 = w_ref[2 * INTER:3 * INTER, :]
    Wl2 = w_ref[W2_OFF + 0 * CHANNELS:W2_OFF + 1 * CHANNELS, 0:INTER]
    Wm2 = w_ref[W2_OFF + 1 * CHANNELS:W2_OFF + 2 * CHANNELS, 0:INTER]
    Wg2 = w_ref[W2_OFF + 2 * CHANNELS:W2_OFF + 3 * CHANNELS, 0:INTER]

    bl1 = b_ref[0:INTER, 0:1]
    bg1 = b_ref[0:INTER, 1:2]
    bm1 = b_ref[0:INTER, 2:3]
    bl2 = b_ref[:, 3:4]
    bm2 = b_ref[:, 4:5]
    bg2 = b_ref[:, 5:6]

    def attention_weight(v, W1, b1, W2, b2):
        # local branch: conv1(+BN1) -> ReLU -> conv2(+BN2)        : [C, HW]
        h = jnp.maximum(jnp.dot(W1, v, preferred_element_type=jnp.float32) + b1, 0.0)
        local = jnp.dot(W2, h, preferred_element_type=jnp.float32) + b2
        # global branch: avg-pool -> conv1 -> ReLU -> conv2        : [C, 1]
        g = jnp.mean(v, axis=-1, keepdims=True)                                       # [C, 1]
        hg = jnp.maximum(jnp.dot(Wg1, g, preferred_element_type=jnp.float32) + bg1, 0.0)
        glob = jnp.dot(Wg2, hg, preferred_element_type=jnp.float32) + bg2             # [C, 1]
        # xlg = local + global (lane-broadcast), then sigmoid
        return jax.nn.sigmoid(local + glob)

    diff = x - res
    wei = attention_weight(x + res, Wl1, bl1, Wl2, bl2)
    xi = res + wei * diff                        # == x*wei + res*(1-wei)
    wei2 = attention_weight(xi, Wm1, bm1, Wm2, bm2)   # global_att reused, as in PyTorch
    o_ref[0] = (res + wei2 * diff).astype(o_ref.dtype)


# --------------------------------- wrapper -----------------------------------

def iaff_forward(x_nchw, res_nchw, w_pack, b_pack):
    B, C, H, W = x_nchw.shape
    HW = H * W
    x = x_nchw.reshape(B, C, HW)          # free reshape (no transpose)
    r = res_nchw.reshape(B, C, HW)

    data_spec = pl.BlockSpec((1, C, HW), lambda b: (b, 0, 0))
    w_spec = pl.BlockSpec(w_pack.shape, lambda b: (0, 0))   # constant block -> fetched once
    b_spec = pl.BlockSpec(b_pack.shape, lambda b: (0, 0))

    out = pl.pallas_call(
        iaff_kernel,
        out_shape=jax.ShapeDtypeStruct((B, C, HW), x.dtype),
        grid=(B,),
        in_specs=[data_spec, data_spec, w_spec, b_spec],
        out_specs=data_spec,
        compiler_params=pltpu.CompilerParams(dimension_semantics=("parallel",)),
    )(x, r, w_pack, b_pack)

    return out.reshape(B, C, H, W)


# --------------------------- raw params + packing -----------------------------

def make_raw_params(key):
    ks = list(jax.random.split(key, 40))

    def nxt():
        return ks.pop(0)

    def conv(cout, cin, scale=0.1):
        W = scale * jax.random.normal(nxt(), (cout, cin), jnp.float32)
        b = scale * jax.random.normal(nxt(), (cout,), jnp.float32)
        return W, b

    def bn(c):
        gamma = 1.0 + 0.1 * jax.random.normal(nxt(), (c,), jnp.float32)
        beta = 0.1 * jax.random.normal(nxt(), (c,), jnp.float32)
        mean = 0.1 * jax.random.normal(nxt(), (c,), jnp.float32)
        var = jnp.abs(1.0 + 0.1 * jax.random.normal(nxt(), (c,), jnp.float32))
        return (gamma, beta, mean, var)

    def local_block():
        W1, b1 = conv(INTER, CHANNELS)
        bn1 = bn(INTER)
        W2, b2 = conv(CHANNELS, INTER)
        bn2 = bn(CHANNELS)
        return dict(W1=W1, b1=b1, bn1=bn1, W2=W2, b2=b2, bn2=bn2)

    def global_block():
        W1, b1 = conv(INTER, CHANNELS)
        W2, b2 = conv(CHANNELS, INTER)
        return dict(W1=W1, b1=b1, W2=W2, b2=b2)

    # global_att2 is constructed in the PyTorch __init__ but never used in forward.
    return {"local": local_block(), "global": global_block(), "local2": local_block()}


def pack_params(raw):
    """Fold eval-mode BN into the conv weights/biases and pack everything into
    one weight array [288, 64] + one bias array [64, 8]."""
    def fold(W, b, bn_params):
        gamma, beta, mean, var = bn_params
        s = gamma / jnp.sqrt(var + BN_EPS)
        return W * s[:, None], b * s + (beta - mean * s)

    l, g, m = raw["local"], raw["global"], raw["local2"]
    Wl1, bl1 = fold(l["W1"], l["b1"], l["bn1"])
    Wl2, bl2 = fold(l["W2"], l["b2"], l["bn2"])
    Wm1, bm1 = fold(m["W1"], m["b1"], m["bn1"])
    Wm2, bm2 = fold(m["W2"], m["b2"], m["bn2"])
    Wg1, bg1 = g["W1"], g["b1"]
    Wg2, bg2 = g["W2"], g["b2"]

    def pad_cols(W):  # [C, INTER] -> [C, C] (zeros on the right, only cols 0:INTER read)
        return jnp.concatenate([W, jnp.zeros((W.shape[0], CHANNELS - INTER), W.dtype)], axis=1)

    w_pack = jnp.concatenate(
        [Wl1, Wg1, Wm1, pad_cols(Wl2), pad_cols(Wm2), pad_cols(Wg2)], axis=0
    )  # [3*INTER + 3*C, C] == [288, 64]

    b_pack = jnp.zeros((CHANNELS, 8), jnp.float32)
    b_pack = b_pack.at[:INTER, 0].set(bl1)
    b_pack = b_pack.at[:INTER, 1].set(bg1)
    b_pack = b_pack.at[:INTER, 2].set(bm1)
    b_pack = b_pack.at[:, 3].set(bl2)
    b_pack = b_pack.at[:, 4].set(bm2)
    b_pack = b_pack.at[:, 5].set(bg2)
    return w_pack, b_pack


# ------------------------------ pure-JAX reference -----------------------------

def iaff_reference(x, res, p):
    def conv1x1(v, W, b):
        return jnp.einsum("oc,bchw->bohw", W, v) + b[None, :, None, None]

    def batchnorm(v, bn_params):
        gamma, beta, mean, var = bn_params
        inv = gamma / jnp.sqrt(var + BN_EPS)
        return v * inv[None, :, None, None] + (beta - mean * inv)[None, :, None, None]

    def local_att(v, pp):
        h = batchnorm(conv1x1(v, pp["W1"], pp["b1"]), pp["bn1"])
        h = jnp.maximum(h, 0.0)
        return batchnorm(conv1x1(h, pp["W2"], pp["b2"]), pp["bn2"])

    def global_att(v, pp):
        g = jnp.mean(v, axis=(2, 3), keepdims=True)
        h = jnp.maximum(conv1x1(g, pp["W1"], pp["b1"]), 0.0)
        return conv1x1(h, pp["W2"], pp["b2"])

    xa = x + res
    wei = jax.nn.sigmoid(local_att(xa, p["local"]) + global_att(xa, p["global"]))
    xi = x * wei + res * (1.0 - wei)
    wei2 = jax.nn.sigmoid(local_att(xi, p["local2"]) + global_att(xi, p["global"]))
    return x * wei2 + res * (1.0 - wei2)


# ----------------------------------- main --------------------------------------

if __name__ == "__main__":
    key = jax.random.PRNGKey(0)
    k_x, k_r, k_p = jax.random.split(key, 3)

    B, C, H, W = 2, CHANNELS, 16, 16
    x = jax.random.normal(k_x, (B, C, H, W), jnp.float32)
    residual = jax.random.normal(k_r, (B, C, H, W), jnp.float32)

    raw = make_raw_params(k_p)
    w_pack, b_pack = pack_params(raw)

    out = iaff_forward(x, residual, w_pack, b_pack)
    out = jax.block_until_ready(out)

    ref = iaff_reference(x, residual, raw)
    assert out.shape == (B, C, H, W)
    max_err = float(jnp.max(jnp.abs(out - ref)))
    assert max_err < 2e-4, f"mismatch vs reference: max_err={max_err}"

    print("KERNEL_OK")
</pallas_src>

<mosaic_0001>
module attributes {stable_mosaic.version = 11 : i64} {
  func.func @iaff_kernel(%arg0: i32, %arg1: memref<1x64x256xf32, #tpu.memory_space<vmem>>, %arg2: memref<1x64x256xf32, #tpu.memory_space<vmem>>, %arg3: memref<288x64xf32, #tpu.memory_space<vmem>>, %arg4: memref<64x8xf32, #tpu.memory_space<vmem>>, %arg5: memref<1x64x256xf32, #tpu.memory_space<vmem>>) attributes {dimension_semantics = [#tpu.dimension_semantics<parallel>], iteration_bounds = array<i64: 2>, scalar_prefetch = 0 : i64, scratch_operands = 0 : i64, tpu.core_type = #tpu.core_type<tc>, window_params = [{transform_indices = @transform_0, window_bounds = array<i64: 1, 64, 256>}, {transform_indices = @transform_1, window_bounds = array<i64: 1, 64, 256>}, {pipeline_mode = #tpu.pipeline_mode<synchronous>, transform_indices = @transform_2, window_bounds = array<i64: 288, 64>}, {pipeline_mode = #tpu.pipeline_mode<synchronous>, transform_indices = @transform_3, window_bounds = array<i64: 64, 8>}, {transform_indices = @transform_4, window_bounds = array<i64: 1, 64, 256>}]} {
    %c0 = arith.constant 0 : index
    %c0_0 = arith.constant 0 : index
    %c0_1 = arith.constant 0 : index
    %0 = vector.load %arg1[%c0, %c0_0, %c0_1] : memref<1x64x256xf32, #tpu.memory_space<vmem>>, vector<1x64x256xf32>
    %1 = vector.shape_cast %0 : vector<1x64x256xf32> to vector<64x256xf32>
    %c0_2 = arith.constant 0 : index
    %c0_3 = arith.constant 0 : index
    %c0_4 = arith.constant 0 : index
    %2 = vector.load %arg2[%c0_2, %c0_3, %c0_4] : memref<1x64x256xf32, #tpu.memory_space<vmem>>, vector<1x64x256xf32>
    %3 = vector.shape_cast %2 : vector<1x64x256xf32> to vector<64x256xf32>
    %c0_5 = arith.constant 0 : index
    %c0_6 = arith.constant 0 : index
    %4 = vector.load %arg3[%c0_5, %c0_6] : memref<288x64xf32, #tpu.memory_space<vmem>>, vector<32x64xf32>
    %c32 = arith.constant 32 : index
    %c0_7 = arith.constant 0 : index
    %5 = vector.load %arg3[%c32, %c0_7] : memref<288x64xf32, #tpu.memory_space<vmem>>, vector<32x64xf32>
    %c64 = arith.constant 64 : index
    %c0_8 = arith.constant 0 : index
    %6 = vector.load %arg3[%c64, %c0_8] : memref<288x64xf32, #tpu.memory_space<vmem>>, vector<32x64xf32>
    %c96 = arith.constant 96 : index
    %c0_9 = arith.constant 0 : index
    %7 = vector.load %arg3[%c96, %c0_9] : memref<288x64xf32, #tpu.memory_space<vmem>>, vector<64x32xf32>
    %c160 = arith.constant 160 : index
    %c0_10 = arith.constant 0 : index
    %8 = vector.load %arg3[%c160, %c0_10] : memref<288x64xf32, #tpu.memory_space<vmem>>, vector<64x32xf32>
    %c224 = arith.constant 224 : index
    %c0_11 = arith.constant 0 : index
    %9 = vector.load %arg3[%c224, %c0_11] : memref<288x64xf32, #tpu.memory_space<vmem>>, vector<64x32xf32>
    %c0_12 = arith.constant 0 : index
    %c0_13 = arith.constant 0 : index
    %10 = vector.load %arg4[%c0_12, %c0_13] : memref<64x8xf32, #tpu.memory_space<vmem>>, vector<32x1xf32>
    %c0_14 = arith.constant 0 : index
    %c1 = arith.constant 1 : index
    %11 = vector.load %arg4[%c0_14, %c1] : memref<64x8xf32, #tpu.memory_space<vmem>>, vector<32x1xf32>
    %c0_15 = arith.constant 0 : index
    %c2 = arith.constant 2 : index
    %12 = vector.load %arg4[%c0_15, %c2] : memref<64x8xf32, #tpu.memory_space<vmem>>, vector<32x1xf32>
    %c0_16 = arith.constant 0 : index
    %c3 = arith.constant 3 : index
    %13 = vector.load %arg4[%c0_16, %c3] : memref<64x8xf32, #tpu.memory_space<vmem>>, vector<64x1xf32>
    %c0_17 = arith.constant 0 : index
    %c4 = arith.constant 4 : index
    %14 = vector.load %arg4[%c0_17, %c4] : memref<64x8xf32, #tpu.memory_space<vmem>>, vector<64x1xf32>
    %c0_18 = arith.constant 0 : index
    %c5 = arith.constant 5 : index
    %15 = vector.load %arg4[%c0_18, %c5] : memref<64x8xf32, #tpu.memory_space<vmem>>, vector<64x1xf32>
    %16 = arith.subf %1, %3 : vector<64x256xf32>
    %17 = arith.addf %1, %3 : vector<64x256xf32>
    %cst = arith.constant dense<0.000000e+00> : vector<32x256xf32>
    %18 = tpu.matmul %4, %17, %cst {dimension_numbers = #tpu.dot_dimension_numbers<[1], [0], [0], [1], [0, 0, 1, 1], [], []>} : vector<32x64xf32>, vector<64x256xf32>, vector<32x256xf32> -> vector<32x256xf32>
    %19 = vector.broadcast %10 : vector<32x1xf32> to vector<32x256xf32>
    %20 = arith.addf %18, %19 : vector<32x256xf32>
    %cst_19 = arith.constant 0.000000e+00 : f32
    %21 = vector.broadcast %cst_19 : f32 to vector<32x256xf32>
    %22 = arith.maximumf %20, %21 : vector<32x256xf32>
    %cst_20 = arith.constant dense<0.000000e+00> : vector<64x256xf32>
    %23 = tpu.matmul %7, %22, %cst_20 {dimension_numbers = #tpu.dot_dimension_numbers<[1], [0], [0], [1], [0, 0, 1, 1], [], []>} : vector<64x32xf32>, vector<32x256xf32>, vector<64x256xf32> -> vector<64x256xf32>
    %24 = vector.broadcast %13 : vector<64x1xf32> to vector<64x256xf32>
    %25 = arith.addf %23, %24 : vector<64x256xf32>
    %cst_21 = arith.constant dense<0.000000e+00> : vector<64xf32>
    %26 = vector.multi_reduction <add>, %17, %cst_21 [1] : vector<64x256xf32> to vector<64xf32>
    %27 = vector.shape_cast %26 : vector<64xf32> to vector<64x1xf32>
    %cst_22 = arith.constant 2.560000e+02 : f32
    %28 = vector.broadcast %cst_22 : f32 to vector<64x1xf32>
    %29 = arith.divf %27, %28 : vector<64x1xf32>
    %cst_23 = arith.constant dense<0.000000e+00> : vector<32x1xf32>
    %30 = tpu.matmul %5, %29, %cst_23 {dimension_numbers = #tpu.dot_dimension_numbers<[1], [0], [0], [1], [0, 0, 1, 1], [], []>} : vector<32x64xf32>, vector<64x1xf32>, vector<32x1xf32> -> vector<32x1xf32>
    %31 = arith.addf %30, %11 : vector<32x1xf32>
    %cst_24 = arith.constant 0.000000e+00 : f32
    %32 = vector.broadcast %cst_24 : f32 to vector<32x1xf32>
    %33 = arith.maximumf %31, %32 : vector<32x1xf32>
    %cst_25 = arith.constant dense<0.000000e+00> : vector<64x1xf32>
    %34 = tpu.matmul %9, %33, %cst_25 {dimension_numbers = #tpu.dot_dimension_numbers<[1], [0], [0], [1], [0, 0, 1, 1], [], []>} : vector<64x32xf32>, vector<32x1xf32>, vector<64x1xf32> -> vector<64x1xf32>
    %35 = arith.addf %34, %15 : vector<64x1xf32>
    %36 = vector.broadcast %35 : vector<64x1xf32> to vector<64x256xf32>
    %37 = arith.addf %25, %36 : vector<64x256xf32>
    %38 = arith.negf %37 : vector<64x256xf32>
    %39 = math.exp %38 : vector<64x256xf32>
    %cst_26 = arith.constant 1.000000e+00 : f32
    %40 = vector.broadcast %cst_26 : f32 to vector<64x256xf32>
    %41 = arith.addf %40, %39 : vector<64x256xf32>
    %42 = arith.divf %40, %41 : vector<64x256xf32>
    %43 = arith.mulf %42, %16 : vector<64x256xf32>
    %44 = arith.addf %3, %43 : vector<64x256xf32>
    %cst_27 = arith.constant dense<0.000000e+00> : vector<32x256xf32>
    %45 = tpu.matmul %6, %44, %cst_27 {dimension_numbers = #tpu.dot_dimension_numbers<[1], [0], [0], [1], [0, 0, 1, 1], [], []>} : vector<32x64xf32>, vector<64x256xf32>, vector<32x256xf32> -> vector<32x256xf32>
    %46 = vector.broadcast %12 : vector<32x1xf32> to vector<32x256xf32>
    %47 = arith.addf %45, %46 : vector<32x256xf32>
    %cst_28 = arith.constant 0.000000e+00 : f32
    %48 = vector.broadcast %cst_28 : f32 to vector<32x256xf32>
    %49 = arith.maximumf %47, %48 : vector<32x256xf32>
    %cst_29 = arith.constant dense<0.000000e+00> : vector<64x256xf32>
    %50 = tpu.matmul %8, %49, %cst_29 {dimension_numbers = #tpu.dot_dimension_numbers<[1], [0], [0], [1], [0, 0, 1, 1], [], []>} : vector<64x32xf32>, vector<32x256xf32>, vector<64x256xf32> -> vector<64x256xf32>
    %51 = vector.broadcast %14 : vector<64x1xf32> to vector<64x256xf32>
    %52 = arith.addf %50, %51 : vector<64x256xf32>
    %cst_30 = arith.constant dense<0.000000e+00> : vector<64xf32>
    %53 = vector.multi_reduction <add>, %44, %cst_30 [1] : vector<64x256xf32> to vector<64xf32>
    %54 = vector.shape_cast %53 : vector<64xf32> to vector<64x1xf32>
    %cst_31 = arith.constant 2.560000e+02 : f32
    %55 = vector.broadcast %cst_31 : f32 to vector<64x1xf32>
    %56 = arith.divf %54, %55 : vector<64x1xf32>
    %cst_32 = arith.constant dense<0.000000e+00> : vector<32x1xf32>
    %57 = tpu.matmul %5, %56, %cst_32 {dimension_numbers = #tpu.dot_dimension_numbers<[1], [0], [0], [1], [0, 0, 1, 1], [], []>} : vector<32x64xf32>, vector<64x1xf32>, vector<32x1xf32> -> vector<32x1xf32>
    %58 = arith.addf %57, %11 : vector<32x1xf32>
    %cst_33 = arith.constant 0.000000e+00 : f32
    %59 = vector.broadcast %cst_33 : f32 to vector<32x1xf32>
    %60 = arith.maximumf %58, %59 : vector<32x1xf32>
    %cst_34 = arith.constant dense<0.000000e+00> : vector<64x1xf32>
    %61 = tpu.matmul %9, %60, %cst_34 {dimension_numbers = #tpu.dot_dimension_numbers<[1], [0], [0], [1], [0, 0, 1, 1], [], []>} : vector<64x32xf32>, vector<32x1xf32>, vector<64x1xf32> -> vector<64x1xf32>
    %62 = arith.addf %61, %15 : vector<64x1xf32>
    %63 = vector.broadcast %62 : vector<64x1xf32> to vector<64x256xf32>
    %64 = arith.addf %52, %63 : vector<64x256xf32>
    %65 = arith.negf %64 : vector<64x256xf32>
    %66 = math.exp %65 : vector<64x256xf32>
    %cst_35 = arith.constant 1.000000e+00 : f32
    %67 = vector.broadcast %cst_35 : f32 to vector<64x256xf32>
    %68 = arith.addf %67, %66 : vector<64x256xf32>
    %69 = arith.divf %67, %68 : vector<64x256xf32>
    %70 = arith.mulf %69, %16 : vector<64x256xf32>
    %71 = arith.addf %3, %70 : vector<64x256xf32>
    %c0_36 = arith.constant 0 : index
    %c0_37 = arith.constant 0 : index
    %c0_38 = arith.constant 0 : index
    %72 = vector.load %arg5[%c0_36, %c0_37, %c0_38] : memref<1x64x256xf32, #tpu.memory_space<vmem>>, vector<1x64x256xf32>
    %73 = vector.shape_cast %72 : vector<1x64x256xf32> to vector<64x256xf32>
    %74 = vector.shape_cast %71 : vector<64x256xf32> to vector<1x64x256xf32>
    tpu.vector_store %arg5[%c0_36, %c0_37, %c0_38], %74 {strides = array<i32>} : memref<1x64x256xf32, #tpu.memory_space<vmem>>, vector<1x64x256xf32>,
    return
  }
  func.func @transform_0(%arg0: i32) -> (i32, i32, i32) {
    %c0_i32 = arith.constant 0 : i32
    %c0_i32_0 = arith.constant 0 : i32
    %c0_i32_1 = arith.constant 0 : i32
    return %arg0, %c0_i32, %c0_i32_0 : i32, i32, i32
  }
  func.func @transform_1(%arg0: i32) -> (i32, i32, i32) {
    %c0_i32 = arith.constant 0 : i32
    %c0_i32_0 = arith.constant 0 : i32
    %c0_i32_1 = arith.constant 0 : i32
    return %arg0, %c0_i32, %c0_i32_0 : i32, i32, i32
  }
  func.func @transform_2(%arg0: i32) -> (i32, i32) {
    %c0_i32 = arith.constant 0 : i32
    %c0_i32_0 = arith.constant 0 : i32
    %c0_i32_1 = arith.constant 0 : i32
    return %c0_i32, %c0_i32_0 : i32, i32
  }
  func.func @transform_3(%arg0: i32) -> (i32, i32) {
    %c0_i32 = arith.constant 0 : i32
    %c0_i32_0 = arith.constant 0 : i32
    %c0_i32_1 = arith.constant 0 : i32
    return %c0_i32, %c0_i32_0 : i32, i32
  }
  func.func @transform_4(%arg0: i32) -> (i32, i32, i32) {
    %c0_i32 = arith.constant 0 : i32
    %c0_i32_0 = arith.constant 0 : i32
    %c0_i32_1 = arith.constant 0 : i32
    return %arg0, %c0_i32, %c0_i32_0 : i32, i32, i32
  }
}

</mosaic_0001>

<llo_original>
// kernel: tpu_custom_call.1
$region0: #{tpu_custom_call.1}
  #allocation0 [shape = 'u32[]', space=smem, size = 0x4, offset = 0x4, fixed_abs, tag = 'smem constant byte address 0x4 - core index']
  #allocation1 [shape = 'u32[144,128]{1,0:T(1,128)}', space=vmem, size = 0x12000, scoped, tag = 'internal scratch']
  %s0 = inlined_call_operand.vmem [shape: f32[2,64,256], index: 0, kind: input, shape index: {}]
  %s1 = inlined_call_operand.vmem [shape: f32[2,64,256], index: 1, kind: input, shape index: {}]
  %s2 = inlined_call_operand.vmem [shape: f32[288,64], index: 2, kind: input, shape index: {}]
  %s3 = inlined_call_operand.vmem [shape: f32[64,8], index: 3, kind: input, shape index: {}]
  %s4 = inlined_call_operand.hbm [shape: f32[2,64,256], index: 4, kind: output, shape index: {}]
  %s5 = sld [smem:[#allocation0]]
  $region49: #{tpu_custom_call.1} parent=0
    _
  %s7 = ssub.s32 1, %s5
  %s8 = scalar_select 0, %s7, %s5
  $region1: #{tpu_custom_call.1} parent=0
    #allocation2 [shape = 'u8[131072]{0}', space=vmem, size = 0x20000, scoped, tag = 'output window, operand 0']
    #allocation3 [shape = 's32[2]{0}', space=sflag, size = 0x8, scoped, tag = 'scoped memory for tpu_custom_call.1']
    %9 = vsyncpa [#allocation3], 0
    %s10 = scalar_lea.sflag [#allocation3], 1
    %11 = vsyncpa %s10, 0
    loop: start=0, step=1, limit=4
    $region2: #{tpu_custom_call.1} parent=1 // loop_pre_header
      _
    $region3: #{tpu_custom_call.1} parent=1 // loop_header
      %s13 = sphi 0, %s17
      %p14 = scmp.ge.s32.totalorder %s13, 4
      %s23 = sphi 0, %s25
      %s26 = sphi 0, %s23
      %s27 = sphi 0, %s26
      %s43 = sphi 0, %s27
      %s49 = sphi 0, %s51
      %s52 = sphi 0, %s49
      %s53 = sphi 0, %s52
      %s69 = sphi 0, %s53
      %s73 = sphi 0, %s73
      %s75 = sphi 0, %s73
      %s76 = sphi 0, %s75
      %s90 = sphi 0, %s76
      %s94 = sphi 0, %s94
      %s96 = sphi 0, %s94
      %s97 = sphi 0, %s96
      %s111 = sphi 0, %s97
      %s117 = sphi 0, %s119
      %s120 = sphi 0, %s117
      %s121 = sphi 0, %s120
      %s137 = sphi 0, %s121
    $region4: #{tpu_custom_call.1} parent=1 // loop_header_branch
      %16 = sbr.rel (%p14) target = $region8
    $region5: #{tpu_custom_call.1} parent=1 // loop_body
      %s18 = ssub.s32 %s13, 1
      %s19 = ssub.s32 %s13, 2
      %s20 = sadd.s32 %s13, 1
      %s21 = ssub.s32 %s13, %s20
      %p22 = scmp.eq.s32.totalorder %s21, 0
      %s24 = sadd.s32 %s23, 1
      %s25 = scalar_select %p22, %s23, %s24
      %p28 = pneg %p22
      %p29 = scmp.eq.s32.totalorder %s13, 1
      %p30 = por %p28, %p29
      %p31 = scmp.ne.s32.totalorder %s23, %s26
      %p32 = scmp.eq.s32.totalorder %s13, 0
      %p33 = por %p31, %p32
      %p34 = scmp.ne.s32.totalorder %s23, %s26
      %p35 = scmp.eq.s32.totalorder %s18, 1
      %p36 = por %p34, %p35
      %p37 = scmp.ne.s32.totalorder %s26, %s27
      %p38 = scmp.eq.s32.totalorder %s18, 0
      %p39 = por %p37, %p38
      %p40 = scmp.ne.s32.totalorder %s26, %s27
      %p41 = scmp.eq.s32.totalorder %s19, 1
      %p42 = por %p40, %p41
      %p44 = scmp.ne.s32.totalorder %s27, %s43
      %p45 = scmp.eq.s32.totalorder %s19, 0
      %p46 = por %p44, %p45
      %s47 = ssub.s32 %s13, %s20
      %p48 = scmp.eq.s32.totalorder %s47, 0
      %s50 = sadd.s32 %s49, 1
      %s51 = scalar_select %p48, %s49, %s50
      %p54 = pneg %p48
      %p55 = scmp.eq.s32.totalorder %s13, 1
      %p56 = por %p54, %p55
      %p57 = scmp.ne.s32.totalorder %s49, %s52
      %p58 = scmp.eq.s32.totalorder %s13, 0
      %p59 = por %p57, %p58
      %p60 = scmp.ne.s32.totalorder %s49, %s52
      %p61 = scmp.eq.s32.totalorder %s18, 1
      %p62 = por %p60, %p61
      %p63 = scmp.ne.s32.totalorder %s52, %s53
      %p64 = scmp.eq.s32.totalorder %s18, 0
      %p65 = por %p63, %p64
      %p66 = scmp.ne.s32.totalorder %s52, %s53
      %p67 = scmp.eq.s32.totalorder %s19, 1
      %p68 = por %p66, %p67
      %p70 = scmp.ne.s32.totalorder %s53, %s69
      %p71 = scmp.eq.s32.totalorder %s19, 0
      %p72 = por %p70, %p71
      %s74 = sadd.s32 %s73, 1
      %p77 = scmp.eq.s32.totalorder %s13, 1
      %p78 = scmp.ne.s32.totalorder %s73, %s75
      %p79 = scmp.eq.s32.totalorder %s13, 0
      %p80 = por %p78, %p79
      %p81 = scmp.ne.s32.totalorder %s73, %s75
      %p82 = scmp.eq.s32.totalorder %s18, 1
      %p83 = por %p81, %p82
      %p84 = scmp.ne.s32.totalorder %s75, %s76
      %p85 = scmp.eq.s32.totalorder %s18, 0
      %p86 = por %p84, %p85
      %p87 = scmp.ne.s32.totalorder %s75, %s76
      %p88 = scmp.eq.s32.totalorder %s19, 1
      %p89 = por %p87, %p88
      %p91 = scmp.ne.s32.totalorder %s76, %s90
      %p92 = scmp.eq.s32.totalorder %s19, 0
      %p93 = por %p91, %p92
      %s95 = sadd.s32 %s94, 1
      %p98 = scmp.eq.s32.totalorder %s13, 1
      %p99 = scmp.ne.s32.totalorder %s94, %s96
      %p100 = scmp.eq.s32.totalorder %s13, 0
      %p101 = por %p99, %p100
      %p102 = scmp.ne.s32.totalorder %s94, %s96
      %p103 = scmp.eq.s32.totalorder %s18, 1
      %p104 = por %p102, %p103
      %p105 = scmp.ne.s32.totalorder %s96, %s97
      %p106 = scmp.eq.s32.totalorder %s18, 0
      %p107 = por %p105, %p106
      %p108 = scmp.ne.s32.totalorder %s96, %s97
      %p109 = scmp.eq.s32.totalorder %s19, 1
      %p110 = por %p108, %p109
      %p112 = scmp.ne.s32.totalorder %s97, %s111
      %p113 = scmp.eq.s32.totalorder %s19, 0
      %p114 = por %p112, %p113
      %s115 = ssub.s32 %s13, %s20
      %p116 = scmp.eq.s32.totalorder %s115, 0
      %s118 = sadd.s32 %s117, 1
      %s119 = scalar_select %p116, %s117, %s118
      %p122 = pneg %p116
      %p123 = scmp.eq.s32.totalorder %s13, 1
      %p124 = por %p122, %p123
      %p125 = scmp.ne.s32.totalorder %s117, %s120
      %p126 = scmp.eq.s32.totalorder %s13, 0
      %p127 = por %p125, %p126
      %p128 = scmp.ne.s32.totalorder %s117, %s120
      %p129 = scmp.eq.s32.totalorder %s18, 1
      %p130 = por %p128, %p129
      %p131 = scmp.ne.s32.totalorder %s120, %s121
      %p132 = scmp.eq.s32.totalorder %s18, 0
      %p133 = por %p131, %p132
      %p134 = scmp.ne.s32.totalorder %s120, %s121
      %p135 = scmp.eq.s32.totalorder %s19, 1
      %p136 = por %p134, %p135
      %p138 = scmp.ne.s32.totalorder %s121, %s137
      %p139 = scmp.eq.s32.totalorder %s19, 0
      %p140 = por %p138, %p139
      %p141 = scmp.le.s32.totalorder 1, %s13
      %p142 = scmp.lt.s32.totalorder %s13, 3
      %p143 = pnand %p141, %p142
      %p144 = pneg %p143
      // Predicated region
      $region9: #{tpu_custom_call.1} parent=5 // pred_check
        _
      $region10: #{tpu_custom_call.1} parent=5 // pred_check_branch
        %146 = sbr.rel (%p143) target = $region12
      $region11: #{tpu_custom_call.1} parent=5 // pred_region
        %s147 = ssub.s32 %s13, 1
        // Predicated region
        $region13: #{tpu_custom_call.1} parent=11 // pred_check
          %p148 = pneg %p86
        $region14: #{tpu_custom_call.1} parent=11 // pred_check_branch
          %150 = sbr.rel (%p148) target = $region16
        $region15: #{tpu_custom_call.1} parent=11 // pred_region
          _
        $region16: #{tpu_custom_call.1} parent=11 // pred_fallthru
          _
        // Predicated region
        $region17: #{tpu_custom_call.1} parent=11 // pred_check
          %p151 = pneg %p107
        $region18: #{tpu_custom_call.1} parent=11 // pred_check_branch
          %153 = sbr.rel (%p151) target = $region20
        $region19: #{tpu_custom_call.1} parent=11 // pred_region
          _
        $region20: #{tpu_custom_call.1} parent=11 // pred_fallthru
          _
      $region12: #{tpu_custom_call.1} parent=5 // pred_fallthru
        _
      %p154 = scmp.lt.s32.totalorder %s13, 2
      // Predicated region
      $region21: #{tpu_custom_call.1} parent=5 // pred_check
        %p155 = pneg %p154
      $region22: #{tpu_custom_call.1} parent=5 // pred_check_branch
        %157 = sbr.rel (%p155) target = $region24
      $region23: #{tpu_custom_call.1} parent=5 // pred_region
        // Predicated region
        $region25: #{tpu_custom_call.1} parent=23 // pred_check
          %p158 = pneg %p33
        $region26: #{tpu_custom_call.1} parent=23 // pred_check_branch
          %160 = sbr.rel (%p158) target = $region28
        $region27: #{tpu_custom_call.1} parent=23 // pred_region
          %p161 = scmp.lt.s32.totalorder %s13, 1
          %s162 = scalar_select %p161, %s13, 1
          %s163 = smul.addr %s162, 16
          %s164 = smul.addr %s163, 8
          %s165 = scalar_lea.vmem %s0, %s164
        $region28: #{tpu_custom_call.1} parent=23 // pred_fallthru
          _
        // Predicated region
        $region29: #{tpu_custom_call.1} parent=23 // pred_check
          %p166 = pneg %p59
        $region30: #{tpu_custom_call.1} parent=23 // pred_check_branch
          %168 = sbr.rel (%p166) target = $region32
        $region31: #{tpu_custom_call.1} parent=23 // pred_region
          %p169 = scmp.lt.s32.totalorder %s13, 1
          %s170 = scalar_select %p169, %s13, 1
          %s171 = smul.addr %s170, 16
          %s172 = smul.addr %s171, 8
          %s173 = scalar_lea.vmem %s1, %s172
        $region32: #{tpu_custom_call.1} parent=23 // pred_fallthru
          _
      $region24: #{tpu_custom_call.1} parent=5 // pred_fallthru
        _
      %p174 = scmp.le.s32.totalorder 1, %s13
      %p175 = scmp.lt.s32.totalorder %s13, 3
      %p176 = pnand %p174, %p175
      %p177 = pneg %p176
      // Predicated region
      $region33: #{tpu_custom_call.1} parent=5 // pred_check
        _
      $region34: #{tpu_custom_call.1} parent=5 // pred_check_branch
        %179 = sbr.rel (%p176) target = $region36
      $region35: #{tpu_custom_call.1} parent=5 // pred_region
        %s180 = ssub.s32 %s13, 1
        %p181 = scmp.lt.s32.totalorder %s18, 1
        %s182 = scalar_select %p181, %s18, 1
        %s183 = smul.addr %s182, 16
        %s184 = smul.addr %s183, 8
        %s185 = scalar_lea.vmem %s0, %s184
        %p186 = pneg %p39
        %p187 = pneg %p36
        %p188 = scmp.lt.s32.totalorder %s18, 1
        %s189 = scalar_select %p188, %s18, 1
        %s190 = smul.addr %s189, 16
        %s191 = smul.addr %s190, 8
        %s192 = scalar_lea.vmem %s1, %s191
        %p193 = pneg %p65
        %p194 = pneg %p62
        %p195 = pneg %p86
        %p196 = pneg %p83
        %p197 = pneg %p107
        %p198 = pneg %p104
        %p199 = pneg %p133
        %p200 = pneg %p130
        %s201 = sand.u32 %s120, 1
        %s202 = scalar_lea.sflag [#allocation3], %s201
        %s203 = sand.u32 %s120, 1
        %s204 = smul.addr %s203, 128
        %s205 = scalar_lea.vmem [#allocation2], %s204
        %p206 = scmp.lt.s32.totalorder %s18, 1
        %s207 = scalar_select %p206, %s18, 1
        %s208 = smul.addr %s207, 16
        %s209 = smul.addr %s208, 8
        %s210 = scalar_lea.vmem %s0, %s209
        %p211 = scmp.lt.s32.totalorder %s18, 1
        %s212 = scalar_select %p211, %s18, 1
        %s213 = smul.addr %s212, 16
        %s214 = smul.addr %s213, 8
        %s215 = scalar_lea.vmem %s1, %s214
        %v216 = vld [vmem:[%s210] sm:$0xff]
        %v217 = vld [vmem:[%s210 + $0x8] sm:$0xff]
        %v218 = vld [vmem:[%s210 + $0x10] sm:$0xff]
        %v219 = vld [vmem:[%s210 + $0x18] sm:$0xff]
        %v220 = vld [vmem:[%s210 + $0x20] sm:$0xff]
        %v221 = vld [vmem:[%s210 + $0x28] sm:$0xff]
        %v222 = vld [vmem:[%s210 + $0x30] sm:$0xff]
        %v223 = vld [vmem:[%s210 + $0x38] sm:$0xff]
        %v224 = vld [vmem:[%s210 + $0x40] sm:$0xff]
        %v225 = vld [vmem:[%s210 + $0x48] sm:$0xff]
        %v226 = vld [vmem:[%s210 + $0x50] sm:$0xff]
        %v227 = vld [vmem:[%s210 + $0x58] sm:$0xff]
        %v228 = vld [vmem:[%s210 + $0x60] sm:$0xff]
        %v229 = vld [vmem:[%s210 + $0x68] sm:$0xff]
        %v230 = vld [vmem:[%s210 + $0x70] sm:$0xff]
        %v231 = vld [vmem:[%s210 + $0x78] sm:$0xff]
        %v232 = vld [vmem:[%s215] sm:$0xff]
        %v233 = vld [vmem:[%s215 + $0x8] sm:$0xff]
        %v234 = vld [vmem:[%s215 + $0x10] sm:$0xff]
        %v235 = vld [vmem:[%s215 + $0x18] sm:$0xff]
        %v236 = vld [vmem:[%s215 + $0x20] sm:$0xff]
        %v237 = vld [vmem:[%s215 + $0x28] sm:$0xff]
        %v238 = vld [vmem:[%s215 + $0x30] sm:$0xff]
        %v239 = vld [vmem:[%s215 + $0x38] sm:$0xff]
        %v240 = vld [vmem:[%s215 + $0x40] sm:$0xff]
        %v241 = vld [vmem:[%s215 + $0x48] sm:$0xff]
        %v242 = vld [vmem:[%s215 + $0x50] sm:$0xff]
        %v243 = vld [vmem:[%s215 + $0x58] sm:$0xff]
        %v244 = vld [vmem:[%s215 + $0x60] sm:$0xff]
        %v245 = vld [vmem:[%s215 + $0x68] sm:$0xff]
        %v246 = vld [vmem:[%s215 + $0x70] sm:$0xff]
        %v247 = vld [vmem:[%s215 + $0x78] sm:$0xff]
        %v248 = vld [vmem:[%s2] sm:$0xff]
        %v249 = vld [vmem:[%s2 + $0x8] sm:$0xff]
        %v250 = vld [vmem:[%s2 + $0x10] sm:$0xff]
        %v251 = vld [vmem:[%s2 + $0x18] sm:$0xff]
        %v252 = vld [vmem:[%s2 + $0x20] sm:$0xff]
        %v253 = vld [vmem:[%s2 + $0x28] sm:$0xff]
        %v254 = vld [vmem:[%s2 + $0x30] sm:$0xff]
        %v255 = vld [vmem:[%s2 + $0x38] sm:$0xff]
        %v256 = vld [vmem:[%s2 + $0x40] sm:$0xff]
        %v257 = vld [vmem:[%s2 + $0x48] sm:$0xff]
        %v258 = vld [vmem:[%s2 + $0x50] sm:$0xff]
        %v259 = vld [vmem:[%s2 + $0x58] sm:$0xff]
        %v260 = vld [vmem:[%s2 + $0x60] sm:$0xff]
        %v261 = vld [vmem:[%s2 + $0x68] sm:$0xff]
        %v262 = vld [vmem:[%s2 + $0x70] sm:$0xff]
        %v263 = vld [vmem:[%s2 + $0x78] sm:$0xff]
        %v264 = vld [vmem:[%s2 + $0x80] sm:$0xff]
        %v265 = vld [vmem:[%s2 + $0x88] sm:$0xff]
        %v266 = vld [vmem:[%s2 + $0x90] sm:$0xff]
        %v267 = vld [vmem:[%s2 + $0x98] sm:$0xff]
        %v268 = vld [vmem:[%s2 + $0xa0] sm:$0xff]
        %v269 = vld [vmem:[%s2 + $0xa8] sm:$0xff]
        %v270 = vld [vmem:[%s2 + $0xb0] sm:$0xff]
        %v271 = vld [vmem:[%s2 + $0xb8] sm:$0xff]
        %v272 = vld [vmem:[%s2 + $0xc0] sm:$0xff]
        %v273 = vld [vmem:[%s2 + $0xc8] sm:$0xff]
        %v274 = vld [vmem:[%s2 + $0xd0] sm:$0xff]
        %v275 = vld [vmem:[%s2 + $0xd8] sm:$0xff]
        %v276 = vld [vmem:[%s2 + $0xe0] sm:$0xff]
        %v277 = vld [vmem:[%s2 + $0xe8] sm:$0xff]
        %v278 = vld [vmem:[%s2 + $0xf0] sm:$0xff]
        %v279 = vld [vmem:[%s2 + $0xf8] sm:$0xff]
        %v280 = vld [vmem:[%s2 + $0x100] sm:$0xff]
        %v281 = vld [vmem:[%s2 + $0x108] sm:$0xff]
        %v282 = vld [vmem:[%s2 + $0x110] sm:$0xff]
        %v283 = vld [vmem:[%s2 + $0x118] sm:$0xff]
        %v284 = vld [vmem:[%s3] sm:$0xff]
        %v285 = vld [vmem:[%s3 + $0x8] sm:$0xff]
        %v286 = vld [vmem:[%s3 + $0x10] sm:$0xff]
        %v287 = vld [vmem:[%s3 + $0x18] sm:$0xff]
        %v288 = vld [vmem:[%s3 + $0x20] sm:$0xff]
        %v289 = vld [vmem:[%s3 + $0x28] sm:$0xff]
        %v290 = vld [vmem:[%s3 + $0x30] sm:$0xff]
        %v291 = vld [vmem:[%s3 + $0x38] sm:$0xff]
        %v292 = vsub.f32 %v216, %v232
        %v293 = vsub.f32 %v217, %v233
        %v294 = vsub.f32 %v218, %v234
        %v295 = vsub.f32 %v219, %v235
        %v296 = vsub.f32 %v220, %v236
        %v297 = vsub.f32 %v221, %v237
        %v298 = vsub.f32 %v222, %v238
        %v299 = vsub.f32 %v223, %v239
        %v300 = vsub.f32 %v224, %v240
        %v301 = vsub.f32 %v225, %v241
        %v302 = vsub.f32 %v226, %v242
        %v303 = vsub.f32 %v227, %v243
        %v304 = vsub.f32 %v228, %v244
        %v305 = vsub.f32 %v229, %v245
        %v306 = vsub.f32 %v230, %v246
        %v307 = vsub.f32 %v231, %v247
        %v308 = vadd.f32 %v216, %v232
        %v309 = vadd.f32 %v217, %v233
        %v310 = vadd.f32 %v218, %v234
        %v311 = vadd.f32 %v219, %v235
        %v312 = vadd.f32 %v220, %v236
        %v313 = vadd.f32 %v221, %v237
        %v314 = vadd.f32 %v222, %v238
        %v315 = vadd.f32 %v223, %v239
        %v316 = vadd.f32 %v224, %v240
        %v317 = vadd.f32 %v225, %v241
        %v318 = vadd.f32 %v226, %v242
        %v319 = vadd.f32 %v227, %v243
        %v320 = vadd.f32 %v228, %v244
        %v321 = vadd.f32 %v229, %v245
        %v322 = vadd.f32 %v230, %v246
        %v323 = vadd.f32 %v231, %v247
        %325 = vset.pattern.permute.xlu0 0
        %326 = vperm.xlu0 %325, %v284
        %v327 = vpop.permute.xlu0 %326
        %330 = vset.pattern.permute.xlu0 0
        %331 = vperm.xlu0 %330, %v285
        %v332 = vpop.permute.xlu0 %331
        %335 = vset.pattern.permute.xlu0 0
        %336 = vperm.xlu0 %335, %v286
        %v337 = vpop.permute.xlu0 %336
        %340 = vset.pattern.permute.xlu0 0
        %341 = vperm.xlu0 %340, %v287
        %v342 = vpop.permute.xlu0 %341
        %vm344 = vcmask 523264
        %v346 = vsel %vm344, %v248, 0
        %v349 = vsel %vm344, %v249, 0
        %v352 = vsel %vm344, %v250, 0
        %v355 = vsel %vm344, %v251, 0
        %357 = vmatprep.subr.mxu0 %v309
        %358 = vmatpush1.msra.mxu0 %v308
        %359 = vmatprep.subr.mxu0 %v311
        %360 = vmatpush1.msra.mxu0 %v310
        %361 = vmatprep.subr.mxu0 %v313
        %362 = vmatpush1.msra.mxu0 %v312
        %363 = vmatprep.subr.mxu0 %v315
        %364 = vmatpush1.msra.mxu0 %v314
        %365 = vmatprep.subr.mxu0 %v317
        %366 = vmatpush1.msra.mxu0 %v316
        %367 = vmatprep.subr.mxu0 %v319
        %368 = vmatpush1.msra.mxu0 %v318
        %369 = vmatprep.subr.mxu0 %v321
        %370 = vmatpush1.msra.mxu0 %v320
        %371 = vmatprep.subr.mxu0 %v323
        %372 = vmatpush1.msra.mxu0 %v322
        %373 = vmatprep.subr.mxu0 0.0
        %374 = vmatpush1.msra.mxu0 0.0
        %375 = vmatprep.subr.mxu0 0.0
        %376 = vmatpush1.msra.mxu0 0.0
        %377 = vmatprep.subr.mxu0 0.0
        %378 = vmatpush1.msra.mxu0 0.0
        %379 = vmatprep.subr.mxu0 0.0
        %380 = vmatpush1.msra.mxu0 0.0
        %381 = vmatprep.subr.mxu0 0.0
        %382 = vmatpush1.msra.mxu0 0.0
        %383 = vmatprep.subr.mxu0 0.0
        %384 = vmatpush1.msra.mxu0 0.0
        %385 = vmatprep.subr.mxu0 0.0
        %386 = vmatpush1.msra.mxu0 0.0
        %387 = vmatprep.subr.mxu0 0.0
        %388 = vmatpush1.msra.mxu0 0.0
        %389 = vmatprep.subr.mxu0 0.0
        %390 = vmatpush1.msra.mxu0 0.0
        %391 = vmatprep.subr.mxu0 0.0
        %392 = vmatpush1.msra.mxu0 0.0
        %393 = vmatprep.subr.mxu0 0.0
        %394 = vmatpush1.msra.mxu0 0.0
        %395 = vmatprep.subr.mxu0 0.0
        %396 = vmatpush1.msra.mxu0 0.0
        %397 = vmatprep.subr.mxu0 0.0
        %398 = vmatpush1.msra.mxu0 0.0
        %399 = vmatprep.subr.mxu0 0.0
        %400 = vmatpush1.msra.mxu0 0.0
        %401 = vmatprep.subr.mxu0 0.0
        %402 = vmatpush1.msra.mxu0 0.0
        %403 = vmatprep.subr.mxu0 0.0
        %404 = vmatpush1.msra.mxu0 0.0
        %405 = vmatprep.subr.mxu0 0.0
        %406 = vmatpush1.msra.mxu0 0.0
        %407 = vmatprep.subr.mxu0 0.0
        %408 = vmatpush1.msra.mxu0 0.0
        %409 = vmatprep.subr.mxu0 0.0
        %410 = vmatpush1.msra.mxu0 0.0
        %411 = vmatprep.subr.mxu0 0.0
        %412 = vmatpush1.msra.mxu0 0.0
        %413 = vmatprep.subr.mxu0 0.0
        %414 = vmatpush1.msra.mxu0 0.0
        %415 = vmatprep.subr.mxu0 0.0
        %416 = vmatpush1.msra.mxu0 0.0
        %417 = vmatprep.subr.mxu0 0.0
        %418 = vmatpush1.msra.mxu0 0.0
        %419 = vmatprep.subr.mxu0 0.0
        %420 = vmatpush1.msra.mxu0 0.0
        %421 = vmatprep.mubr.f32.mxu0 0.0
        %422 = vmatmul.mubr.f32.gmra.mrb[0].mxu0 %v346
        %v423 = vpop.f32.mrb[0].mxu0
        %v424 = vadd.f32 %v327, %v423
        %v425 = vpop.f32.mrb[0].mxu0
        %v426 = vadd.f32 %v327, %v425
        %427 = vmatprep.mubr.f32.mxu0 0.0
        %428 = vmatmul.mubr.f32.gmra.mrb[0].mxu0 %v349
        %v429 = vpop.f32.mrb[0].mxu0
        %v430 = vadd.f32 %v332, %v429
        %v431 = vpop.f32.mrb[0].mxu0
        %v432 = vadd.f32 %v332, %v431
        %433 = vmatprep.mubr.f32.mxu0 0.0
        %434 = vmatmul.mubr.f32.gmra.mrb[0].mxu0 %v352
        %v435 = vpop.f32.mrb[0].mxu0
        %v436 = vadd.f32 %v337, %v435
        %v437 = vpop.f32.mrb[0].mxu0
        %v438 = vadd.f32 %v337, %v437
        %439 = vmatprep.mubr.f32.mxu0 0.0
        %440 = vmatmul.mubr.f32.gmra.mrb[0].mxu0 %v355
        %v441 = vpop.f32.mrb[0].mxu0
        %v442 = vadd.f32 %v342, %v441
        %v443 = vpop.f32.mrb[0].mxu0
        %v444 = vadd.f32 %v342, %v443
        %445 = vdwg.mxu0
        %v446 = vmax.f32 %v424, 0.0
        %v447 = vmax.f32 %v426, 0.0
        %v448 = vmax.f32 %v430, 0.0
        %v449 = vmax.f32 %v432, 0.0
        %v450 = vmax.f32 %v436, 0.0
        %v451 = vmax.f32 %v438, 0.0
        %v452 = vmax.f32 %v442, 0.0
        %v453 = vmax.f32 %v444, 0.0
        %454 = vset.pattern.permute.xlu0 3
        %455 = vperm.xlu0 %454, %v284
        %v456 = vpop.permute.xlu0 %455
        %458 = vset.pattern.permute.xlu0 3
        %459 = vperm.xlu0 %458, %v285
        %v460 = vpop.permute.xlu0 %459
        %462 = vset.pattern.permute.xlu0 3
        %463 = vperm.xlu0 %462, %v286
        %v464 = vpop.permute.xlu0 %463
        %466 = vset.pattern.permute.xlu0 3
        %467 = vperm.xlu0 %466, %v287
        %v468 = vpop.permute.xlu0 %467
        %471 = vset.pattern.permute.xlu0 3
        %472 = vperm.xlu0 %471, %v288
        %v473 = vpop.permute.xlu0 %472
        %476 = vset.pattern.permute.xlu0 3
        %477 = vperm.xlu0 %476, %v289
        %v478 = vpop.permute.xlu0 %477
        %481 = vset.pattern.permute.xlu0 3
        %482 = vperm.xlu0 %481, %v290
        %v483 = vpop.permute.xlu0 %482
        %486 = vset.pattern.permute.xlu0 3
        %487 = vperm.xlu0 %486, %v291
        %v488 = vpop.permute.xlu0 %487
        %vm490 = vcmask 261120
        %v492 = vsel %vm490, %v260, 0
        %v495 = vsel %vm490, %v261, 0
        %v498 = vsel %vm490, %v262, 0
        %v501 = vsel %vm490, %v263, 0
        %v504 = vsel %vm490, %v264, 0
        %v507 = vsel %vm490, %v265, 0
        %v510 = vsel %vm490, %v266, 0
        %v513 = vsel %vm490, %v267, 0
        %515 = vmatprep.subr.mxu0 %v447
        %516 = vmatpush1.msra.mxu0 %v446
        %517 = vmatprep.subr.mxu0 %v449
        %518 = vmatpush1.msra.mxu0 %v448
        %519 = vmatprep.subr.mxu0 %v451
        %520 = vmatpush1.msra.mxu0 %v450
        %521 = vmatprep.subr.mxu0 %v453
        %522 = vmatpush1.msra.mxu0 %v452
        %523 = vmatprep.subr.mxu0 0.0
        %524 = vmatpush1.msra.mxu0 0.0
        %525 = vmatprep.subr.mxu0 0.0
        %526 = vmatpush1.msra.mxu0 0.0
        %527 = vmatprep.subr.mxu0 0.0
        %528 = vmatpush1.msra.mxu0 0.0
        %529 = vmatprep.subr.mxu0 0.0
        %530 = vmatpush1.msra.mxu0 0.0
        %531 = vmatprep.subr.mxu0 0.0
        %532 = vmatpush1.msra.mxu0 0.0
        %533 = vmatprep.subr.mxu0 0.0
        %534 = vmatpush1.msra.mxu0 0.0
        %535 = vmatprep.subr.mxu0 0.0
        %536 = vmatpush1.msra.mxu0 0.0
        %537 = vmatprep.subr.mxu0 0.0
        %538 = vmatpush1.msra.mxu0 0.0
        %539 = vmatprep.subr.mxu0 0.0
        %540 = vmatpush1.msra.mxu0 0.0
        %541 = vmatprep.subr.mxu0 0.0
        %542 = vmatpush1.msra.mxu0 0.0
        %543 = vmatprep.subr.mxu0 0.0
        %544 = vmatpush1.msra.mxu0 0.0
        %545 = vmatprep.subr.mxu0 0.0
        %546 = vmatpush1.msra.mxu0 0.0
        %547 = vmatprep.subr.mxu0 0.0
        %548 = vmatpush1.msra.mxu0 0.0
        %549 = vmatprep.subr.mxu0 0.0
        %550 = vmatpush1.msra.mxu0 0.0
        %551 = vmatprep.subr.mxu0 0.0
        %552 = vmatpush1.msra.mxu0 0.0
        %553 = vmatprep.subr.mxu0 0.0
        %554 = vmatpush1.msra.mxu0 0.0
        %555 = vmatprep.subr.mxu0 0.0
        %556 = vmatpush1.msra.mxu0 0.0
        %557 = vmatprep.subr.mxu0 0.0
        %558 = vmatpush1.msra.mxu0 0.0
        %559 = vmatprep.subr.mxu0 0.0
        %560 = vmatpush1.msra.mxu0 0.0
        %561 = vmatprep.subr.mxu0 0.0
        %562 = vmatpush1.msra.mxu0 0.0
        %563 = vmatprep.subr.mxu0 0.0
        %564 = vmatpush1.msra.mxu0 0.0
        %565 = vmatprep.subr.mxu0 0.0
        %566 = vmatpush1.msra.mxu0 0.0
        %567 = vmatprep.subr.mxu0 0.0
        %568 = vmatpush1.msra.mxu0 0.0
        %569 = vmatprep.subr.mxu0 0.0
        %570 = vmatpush1.msra.mxu0 0.0
        %571 = vmatprep.subr.mxu0 0.0
        %572 = vmatpush1.msra.mxu0 0.0
        %573 = vmatprep.subr.mxu0 0.0
        %574 = vmatpush1.msra.mxu0 0.0
        %575 = vmatprep.subr.mxu0 0.0
        %576 = vmatpush1.msra.mxu0 0.0
        %577 = vmatprep.subr.mxu0 0.0
        %578 = vmatpush1.msra.mxu0 0.0
        %579 = vmatprep.mubr.f32.mxu0 0.0
        %580 = vmatmul.mubr.f32.gmra.mrb[0].mxu0 %v492
        %v581 = vpop.f32.mrb[0].mxu0
        %v582 = vadd.f32 %v456, %v581
        %v583 = vpop.f32.mrb[0].mxu0
        %v584 = vadd.f32 %v456, %v583
        %585 = vmatprep.mubr.f32.mxu0 0.0
        %586 = vmatmul.mubr.f32.gmra.mrb[0].mxu0 %v495
        %v587 = vpop.f32.mrb[0].mxu0
        %v588 = vadd.f32 %v460, %v587
        %v589 = vpop.f32.mrb[0].mxu0
        %v590 = vadd.f32 %v460, %v589
        %591 = vmatprep.mubr.f32.mxu0 0.0
        %592 = vmatmul.mubr.f32.gmra.mrb[0].mxu0 %v498
        %v593 = vpop.f32.mrb[0].mxu0
        %v594 = vadd.f32 %v464, %v593
        %v595 = vpop.f32.mrb[0].mxu0
        %v596 = vadd.f32 %v464, %v595
        %597 = vmatprep.mubr.f32.mxu0 0.0
        %598 = vmatmul.mubr.f32.gmra.mrb[0].mxu0 %v501
        %v599 = vpop.f32.mrb[0].mxu0
        %v600 = vadd.f32 %v468, %v599
        %v601 = vpop.f32.mrb[0].mxu0
        %v602 = vadd.f32 %v468, %v601
        %603 = vmatprep.mubr.f32.mxu0 0.0
        %604 = vmatmul.mubr.f32.gmra.mrb[0].mxu0 %v504
        %v605 = vpop.f32.mrb[0].mxu0
        %v606 = vadd.f32 %v473, %v605
        %v607 = vpop.f32.mrb[0].mxu0
        %v608 = vadd.f32 %v473, %v607
        %609 = vmatprep.mubr.f32.mxu0 0.0
        %610 = vmatmul.mubr.f32.gmra.mrb[0].mxu0 %v507
        %v611 = vpop.f32.mrb[0].mxu0
        %v612 = vadd.f32 %v478, %v611
        %v613 = vpop.f32.mrb[0].mxu0
        %v614 = vadd.f32 %v478, %v613
        %615 = vmatprep.mubr.f32.mxu0 0.0
        %616 = vmatmul.mubr.f32.gmra.mrb[0].mxu0 %v510
        %v617 = vpop.f32.mrb[0].mxu0
        %v618 = vadd.f32 %v483, %v617
        %v619 = vpop.f32.mrb[0].mxu0
        %v620 = vadd.f32 %v483, %v619
        %621 = vmatprep.mubr.f32.mxu0 0.0
        %622 = vmatmul.mubr.f32.gmra.mrb[0].mxu0 %v513
        %v623 = vpop.f32.mrb[0].mxu0
        %v624 = vadd.f32 %v488, %v623
        %v625 = vpop.f32.mrb[0].mxu0
        %v626 = vadd.f32 %v488, %v625
        %627 = vdwg.mxu0
        %v628 = vadd.f32 %v308, %v309
        %629 = vadd.xlane.f32.xlu0 %v628
        %v630 = vpop.xlane.xlu0 %629
        %v631 = vadd.f32 %v310, %v311
        %632 = vadd.xlane.f32.xlu0 %v631
        %v633 = vpop.xlane.xlu0 %632
        %v634 = vadd.f32 %v312, %v313
        %635 = vadd.xlane.f32.xlu0 %v634
        %v636 = vpop.xlane.xlu0 %635
        %v637 = vadd.f32 %v314, %v315
        %638 = vadd.xlane.f32.xlu0 %v637
        %v639 = vpop.xlane.xlu0 %638
        %v640 = vadd.f32 %v316, %v317
        %641 = vadd.xlane.f32.xlu0 %v640
        %v642 = vpop.xlane.xlu0 %641
        %v643 = vadd.f32 %v318, %v319
        %644 = vadd.xlane.f32.xlu0 %v643
        %v645 = vpop.xlane.xlu0 %644
        %v646 = vadd.f32 %v320, %v321
        %647 = vadd.xlane.f32.xlu0 %v646
        %v648 = vpop.xlane.xlu0 %647
        %v649 = vadd.f32 %v322, %v323
        %650 = vadd.xlane.f32.xlu0 %v649
        %v651 = vpop.xlane.xlu0 %650
        %v652 = vrcp.pop 256.0
        %v653 = vmul.f32 %v630, %v652
        %v654 = vmul.f32 %v633, %v652
        %v655 = vmul.f32 %v636, %v652
        %v656 = vmul.f32 %v639, %v652
        %v657 = vmul.f32 %v642, %v652
        %v658 = vmul.f32 %v645, %v652
        %v659 = vmul.f32 %v648, %v652
        %v660 = vmul.f32 %v651, %v652
        %661 = vrot.lane.b32.xlu0 %v284, 127
        %v662 = vpop.permute.xlu0 %661
        %663 = vrot.lane.b32.xlu0 %v285, 127
        %v664 = vpop.permute.xlu0 %663
        %665 = vrot.lane.b32.xlu0 %v286, 127
        %v666 = vpop.permute.xlu0 %665
        %667 = vrot.lane.b32.xlu0 %v287, 127
        %v668 = vpop.permute.xlu0 %667
        %v674 = vsel %vm344, %v252, 0
        %v677 = vsel %vm344, %v253, 0
        %v680 = vsel %vm344, %v254, 0
        %v683 = vsel %vm344, %v255, 0
        %685 = vmatprep.subr.mxu0 0.0
        %686 = vmatpush1.msra.mxu0 %v653
        %687 = vmatprep.subr.mxu0 0.0
        %688 = vmatpush1.msra.mxu0 %v654
        %689 = vmatprep.subr.mxu0 0.0
        %690 = vmatpush1.msra.mxu0 %v655
        %691 = vmatprep.subr.mxu0 0.0
        %692 = vmatpush1.msra.mxu0 %v656
        %693 = vmatprep.subr.mxu0 0.0
        %694 = vmatpush1.msra.mxu0 %v657
        %695 = vmatprep.subr.mxu0 0.0
        %696 = vmatpush1.msra.mxu0 %v658
        %697 = vmatprep.subr.mxu0 0.0
        %698 = vmatpush1.msra.mxu0 %v659
        %699 = vmatprep.subr.mxu0 0.0
        %700 = vmatpush1.msra.mxu0 %v660
        %701 = vmatprep.subr.mxu0 0.0
        %702 = vmatpush1.msra.mxu0 0.0
        %703 = vmatprep.subr.mxu0 0.0
        %704 = vmatpush1.msra.mxu0 0.0
        %705 = vmatprep.subr.mxu0 0.0
        %706 = vmatpush1.msra.mxu0 0.0
        %707 = vmatprep.subr.mxu0 0.0
        %708 = vmatpush1.msra.mxu0 0.0
        %709 = vmatprep.subr.mxu0 0.0
        %710 = vmatpush1.msra.mxu0 0.0
        %711 = vmatprep.subr.mxu0 0.0
        %712 = vmatpush1.msra.mxu0 0.0
        %713 = vmatprep.subr.mxu0 0.0
        %714 = vmatpush1.msra.mxu0 0.0
        %715 = vmatprep.subr.mxu0 0.0
        %716 = vmatpush1.msra.mxu0 0.0
        %717 = vmatprep.subr.mxu0 0.0
        %718 = vmatpush1.msra.mxu0 0.0
        %719 = vmatprep.subr.mxu0 0.0
        %720 = vmatpush1.msra.mxu0 0.0
        %721 = vmatprep.subr.mxu0 0.0
        %722 = vmatpush1.msra.mxu0 0.0
        %723 = vmatprep.subr.mxu0 0.0
        %724 = vmatpush1.msra.mxu0 0.0
        %725 = vmatprep.subr.mxu0 0.0
        %726 = vmatpush1.msra.mxu0 0.0
        %727 = vmatprep.subr.mxu0 0.0
        %728 = vmatpush1.msra.mxu0 0.0
        %729 = vmatprep.subr.mxu0 0.0
        %730 = vmatpush1.msra.mxu0 0.0
        %731 = vmatprep.subr.mxu0 0.0
        %732 = vmatpush1.msra.mxu0 0.0
        %733 = vmatprep.subr.mxu0 0.0
        %734 = vmatpush1.msra.mxu0 0.0
        %735 = vmatprep.subr.mxu0 0.0
        %736 = vmatpush1.msra.mxu0 0.0
        %737 = vmatprep.subr.mxu0 0.0
        %738 = vmatpush1.msra.mxu0 0.0
        %739 = vmatprep.subr.mxu0 0.0
        %740 = vmatpush1.msra.mxu0 0.0
        %741 = vmatprep.subr.mxu0 0.0
        %742 = vmatpush1.msra.mxu0 0.0
        %743 = vmatprep.subr.mxu0 0.0
        %744 = vmatpush1.msra.mxu0 0.0
        %745 = vmatprep.subr.mxu0 0.0
        %746 = vmatpush1.msra.mxu0 0.0
        %747 = vmatprep.subr.mxu0 0.0
        %748 = vmatpush1.msra.mxu0 0.0
        %749 = vmatprep.mubr.f32.mxu0 0.0
        %750 = vmatmul.mubr.f32.gmra.mrb[0].mxu0 %v674
        %v751 = vpop.f32.mrb[0].mxu0
        %v752 = vadd.f32 %v662, %v751
        %v753 = vpop.f32.mrb[0].mxu0
        %754 = vmatprep.mubr.f32.mxu0 0.0
        %755 = vmatmul.mubr.f32.gmra.mrb[0].mxu0 %v677
        %v756 = vpop.f32.mrb[0].mxu0
        %v757 = vadd.f32 %v664, %v756
        %v758 = vpop.f32.mrb[0].mxu0
        %759 = vmatprep.mubr.f32.mxu0 0.0
        %760 = vmatmul.mubr.f32.gmra.mrb[0].mxu0 %v680
        %v761 = vpop.f32.mrb[0].mxu0
        %v762 = vadd.f32 %v666, %v761
        %v763 = vpop.f32.mrb[0].mxu0
        %764 = vmatprep.mubr.f32.mxu0 0.0
        %765 = vmatmul.mubr.f32.gmra.mrb[0].mxu0 %v683
        %v766 = vpop.f32.mrb[0].mxu0
        %v767 = vadd.f32 %v668, %v766
        %v768 = vpop.f32.mrb[0].mxu0
        %769 = vdwg.mxu0
        %v770 = vmax.f32 %v752, 0.0
        %v771 = vmax.f32 %v757, 0.0
        %v772 = vmax.f32 %v762, 0.0
        %v773 = vmax.f32 %v767, 0.0
        %774 = vrot.lane.b32.xlu0 %v284, 123
        %v775 = vpop.permute.xlu0 %774
        %776 = vrot.lane.b32.xlu0 %v285, 123
        %v777 = vpop.permute.xlu0 %776
        %778 = vrot.lane.b32.xlu0 %v286, 123
        %v779 = vpop.permute.xlu0 %778
        %780 = vrot.lane.b32.xlu0 %v287, 123
        %v781 = vpop.permute.xlu0 %780
        %782 = vrot.lane.b32.xlu0 %v288, 123
        %v783 = vpop.permute.xlu0 %782
        %784 = vrot.lane.b32.xlu0 %v289, 123
        %v785 = vpop.permute.xlu0 %784
        %786 = vrot.lane.b32.xlu0 %v290, 123
        %v787 = vpop.permute.xlu0 %786
        %788 = vrot.lane.b32.xlu0 %v291, 123
        %v789 = vpop.permute.xlu0 %788
        %v799 = vsel %vm490, %v276, 0
        %v802 = vsel %vm490, %v277, 0
        %v805 = vsel %vm490, %v278, 0
        %v808 = vsel %vm490, %v279, 0
        %v811 = vsel %vm490, %v280, 0
        %v814 = vsel %vm490, %v281, 0
        %v817 = vsel %vm490, %v282, 0
        %v820 = vsel %vm490, %v283, 0
        %822 = vmatprep.subr.mxu0 0.0
        %823 = vmatpush1.msra.mxu0 %v770
        %824 = vmatprep.subr.mxu0 0.0
        %825 = vmatpush1.msra.mxu0 %v771
        %826 = vmatprep.subr.mxu0 0.0
        %827 = vmatpush1.msra.mxu0 %v772
        %828 = vmatprep.subr.mxu0 0.0
        %829 = vmatpush1.msra.mxu0 %v773
        %830 = vmatprep.subr.mxu0 0.0
        %831 = vmatpush1.msra.mxu0 0.0
        %832 = vmatprep.subr.mxu0 0.0
        %833 = vmatpush1.msra.mxu0 0.0
        %834 = vmatprep.subr.mxu0 0.0
        %835 = vmatpush1.msra.mxu0 0.0
        %836 = vmatprep.subr.mxu0 0.0
        %837 = vmatpush1.msra.mxu0 0.0
        %838 = vmatprep.subr.mxu0 0.0
        %839 = vmatpush1.msra.mxu0 0.0
        %840 = vmatprep.subr.mxu0 0.0
        %841 = vmatpush1.msra.mxu0 0.0
        %842 = vmatprep.subr.mxu0 0.0
        %843 = vmatpush1.msra.mxu0 0.0
        %844 = vmatprep.subr.mxu0 0.0
        %845 = vmatpush1.msra.mxu0 0.0
        %846 = vmatprep.subr.mxu0 0.0
        %847 = vmatpush1.msra.mxu0 0.0
        %848 = vmatprep.subr.mxu0 0.0
        %849 = vmatpush1.msra.mxu0 0.0
        %850 = vmatprep.subr.mxu0 0.0
        %851 = vmatpush1.msra.mxu0 0.0
        %852 = vmatprep.subr.mxu0 0.0
        %853 = vmatpush1.msra.mxu0 0.0
        %854 = vmatprep.subr.mxu0 0.0
        %855 = vmatpush1.msra.mxu0 0.0
        %856 = vmatprep.subr.mxu0 0.0
        %857 = vmatpush1.msra.mxu0 0.0
        %858 = vmatprep.subr.mxu0 0.0
        %859 = vmatpush1.msra.mxu0 0.0
        %860 = vmatprep.subr.mxu0 0.0
        %861 = vmatpush1.msra.mxu0 0.0
        %862 = vmatprep.subr.mxu0 0.0
        %863 = vmatpush1.msra.mxu0 0.0
        %864 = vmatprep.subr.mxu0 0.0
        %865 = vmatpush1.msra.mxu0 0.0
        %866 = vmatprep.subr.mxu0 0.0
        %867 = vmatpush1.msra.mxu0 0.0
        %868 = vmatprep.subr.mxu0 0.0
        %869 = vmatpush1.msra.mxu0 0.0
        %870 = vmatprep.subr.mxu0 0.0
        %871 = vmatpush1.msra.mxu0 0.0
        %872 = vmatprep.subr.mxu0 0.0
        %873 = vmatpush1.msra.mxu0 0.0
        %874 = vmatprep.subr.mxu0 0.0
        %875 = vmatpush1.msra.mxu0 0.0
        %876 = vmatprep.subr.mxu0 0.0
        %877 = vmatpush1.msra.mxu0 0.0
        %878 = vmatprep.subr.mxu0 0.0
        %879 = vmatpush1.msra.mxu0 0.0
        %880 = vmatprep.subr.mxu0 0.0
        %881 = vmatpush1.msra.mxu0 0.0
        %882 = vmatprep.subr.mxu0 0.0
        %883 = vmatpush1.msra.mxu0 0.0
        %884 = vmatprep.subr.mxu0 0.0
        %885 = vmatpush1.msra.mxu0 0.0
        %886 = vmatprep.mubr.f32.mxu0 0.0
        %887 = vmatmul.mubr.f32.gmra.mrb[0].mxu0 %v799
        %v888 = vpop.f32.mrb[0].mxu0
        %v889 = vadd.f32 %v775, %v888
        %v890 = vpop.f32.mrb[0].mxu0
        %891 = vmatprep.mubr.f32.mxu0 0.0
        %892 = vmatmul.mubr.f32.gmra.mrb[0].mxu0 %v802
        %v893 = vpop.f32.mrb[0].mxu0
        %v894 = vadd.f32 %v777, %v893
        %v895 = vpop.f32.mrb[0].mxu0
        %896 = vmatprep.mubr.f32.mxu0 0.0
        %897 = vmatmul.mubr.f32.gmra.mrb[0].mxu0 %v805
        %v898 = vpop.f32.mrb[0].mxu0
        %v899 = vadd.f32 %v779, %v898
        %v900 = vpop.f32.mrb[0].mxu0
        %901 = vmatprep.mubr.f32.mxu0 0.0
        %902 = vmatmul.mubr.f32.gmra.mrb[0].mxu0 %v808
        %v903 = vpop.f32.mrb[0].mxu0
        %v904 = vadd.f32 %v781, %v903
        %v905 = vpop.f32.mrb[0].mxu0
        %906 = vmatprep.mubr.f32.mxu0 0.0
        %907 = vmatmul.mubr.f32.gmra.mrb[0].mxu0 %v811
        %v908 = vpop.f32.mrb[0].mxu0
        %v909 = vadd.f32 %v783, %v908
        %v910 = vpop.f32.mrb[0].mxu0
        %911 = vmatprep.mubr.f32.mxu0 0.0
        %912 = vmatmul.mubr.f32.gmra.mrb[0].mxu0 %v814
        %v913 = vpop.f32.mrb[0].mxu0
        %v914 = vadd.f32 %v785, %v913
        %v915 = vpop.f32.mrb[0].mxu0
        %916 = vmatprep.mubr.f32.mxu0 0.0
        %917 = vmatmul.mubr.f32.gmra.mrb[0].mxu0 %v817
        %v918 = vpop.f32.mrb[0].mxu0
        %v919 = vadd.f32 %v787, %v918
        %v920 = vpop.f32.mrb[0].mxu0
        %921 = vmatprep.mubr.f32.mxu0 0.0
        %922 = vmatmul.mubr.f32.gmra.mrb[0].mxu0 %v820
        %v923 = vpop.f32.mrb[0].mxu0
        %v924 = vadd.f32 %v789, %v923
        %v925 = vpop.f32.mrb[0].mxu0
        %926 = vdwg.mxu0
        %928 = vset.pattern.permute.xlu0 0
        %929 = vperm.xlu0 %928, %v889
        %v930 = vpop.permute.xlu0 %929
        %933 = vset.pattern.permute.xlu0 0
        %934 = vperm.xlu0 %933, %v894
        %v935 = vpop.permute.xlu0 %934
        %938 = vset.pattern.permute.xlu0 0
        %939 = vperm.xlu0 %938, %v899
        %v940 = vpop.permute.xlu0 %939
        %943 = vset.pattern.permute.xlu0 0
        %944 = vperm.xlu0 %943, %v904
        %v945 = vpop.permute.xlu0 %944
        %948 = vset.pattern.permute.xlu0 0
        %949 = vperm.xlu0 %948, %v909
        %v950 = vpop.permute.xlu0 %949
        %953 = vset.pattern.permute.xlu0 0
        %954 = vperm.xlu0 %953, %v914
        %v955 = vpop.permute.xlu0 %954
        %958 = vset.pattern.permute.xlu0 0
        %959 = vperm.xlu0 %958, %v919
        %v960 = vpop.permute.xlu0 %959
        %963 = vset.pattern.permute.xlu0 0
        %964 = vperm.xlu0 %963, %v924
        %v965 = vpop.permute.xlu0 %964
        %v967 = vadd.f32 %v582, %v930
        %v968 = vadd.f32 %v584, %v930
        %v969 = vadd.f32 %v588, %v935
        %v970 = vadd.f32 %v590, %v935
        %v971 = vadd.f32 %v594, %v940
        %v972 = vadd.f32 %v596, %v940
        %v973 = vadd.f32 %v600, %v945
        %v974 = vadd.f32 %v602, %v945
        %v975 = vadd.f32 %v606, %v950
        %v976 = vadd.f32 %v608, %v950
        %v977 = vadd.f32 %v612, %v955
        %v978 = vadd.f32 %v614, %v955
        %v979 = vadd.f32 %v618, %v960
        %v980 = vadd.f32 %v620, %v960
        %v981 = vadd.f32 %v624, %v965
        %v982 = vadd.f32 %v626, %v965
        %v983 = vxor.u32 %v967, 2147483648
        %v984 = vxor.u32 %v968, 2147483648
        %v985 = vxor.u32 %v969, 2147483648
        %v986 = vxor.u32 %v970, 2147483648
        %v987 = vxor.u32 %v971, 2147483648
        %v988 = vxor.u32 %v972, 2147483648
        %v989 = vxor.u32 %v973, 2147483648
        %v990 = vxor.u32 %v974, 2147483648
        %v991 = vxor.u32 %v975, 2147483648
        %v992 = vxor.u32 %v976, 2147483648
        %v993 = vxor.u32 %v977, 2147483648
        %v994 = vxor.u32 %v978, 2147483648
        %v995 = vxor.u32 %v979, 2147483648
        %v996 = vxor.u32 %v980, 2147483648
        %v997 = vxor.u32 %v981, 2147483648
        %v998 = vxor.u32 %v982, 2147483648
        %v999 = vmul.f32 %v983, 1.442695
        %v1000 = vpow.pop %v999
        %v1001 = vmul.f32 %v984, 1.442695
        %v1002 = vpow.pop %v1001
        %v1003 = vmul.f32 %v985, 1.442695
        %v1004 = vpow.pop %v1003
        %v1005 = vmul.f32 %v986, 1.442695
        %v1006 = vpow.pop %v1005
        %v1007 = vmul.f32 %v987, 1.442695
        %v1008 = vpow.pop %v1007
        %v1009 = vmul.f32 %v988, 1.442695
        %v1010 = vpow.pop %v1009
        %v1011 = vmul.f32 %v989, 1.442695
        %v1012 = vpow.pop %v1011
        %v1013 = vmul.f32 %v990, 1.442695
        %v1014 = vpow.pop %v1013
        %v1015 = vmul.f32 %v991, 1.442695
        %v1016 = vpow.pop %v1015
        %v1017 = vmul.f32 %v992, 1.442695
        %v1018 = vpow.pop %v1017
        %v1019 = vmul.f32 %v993, 1.442695
        %v1020 = vpow.pop %v1019
        %v1021 = vmul.f32 %v994, 1.442695
        %v1022 = vpow.pop %v1021
        %v1023 = vmul.f32 %v995, 1.442695
        %v1024 = vpow.pop %v1023
        %v1025 = vmul.f32 %v996, 1.442695
        %v1026 = vpow.pop %v1025
        %v1027 = vmul.f32 %v997, 1.442695
        %v1028 = vpow.pop %v1027
        %v1029 = vmul.f32 %v998, 1.442695
        %v1030 = vpow.pop %v1029
        %v1031 = vadd.f32 %v1000, 1.0
        %v1032 = vadd.f32 %v1002, 1.0
        %v1033 = vadd.f32 %v1004, 1.0
        %v1034 = vadd.f32 %v1006, 1.0
        %v1035 = vadd.f32 %v1008, 1.0
        %v1036 = vadd.f32 %v1010, 1.0
        %v1037 = vadd.f32 %v1012, 1.0
        %v1038 = vadd.f32 %v1014, 1.0
        %v1039 = vadd.f32 %v1016, 1.0
        %v1040 = vadd.f32 %v1018, 1.0
        %v1041 = vadd.f32 %v1020, 1.0
        %v1042 = vadd.f32 %v1022, 1.0
        %v1043 = vadd.f32 %v1024, 1.0
        %v1044 = vadd.f32 %v1026, 1.0
        %v1045 = vadd.f32 %v1028, 1.0
        %v1046 = vadd.f32 %v1030, 1.0
        %v1047 = vrcp.pop %v1031
        %v1048 = vmul.f32 1.0, %v1047
        %v1049 = vrcp.pop %v1032
        %v1050 = vmul.f32 1.0, %v1049
        %v1051 = vrcp.pop %v1033
        %v1052 = vmul.f32 1.0, %v1051
        %v1053 = vrcp.pop %v1034
        %v1054 = vmul.f32 1.0, %v1053
        %v1055 = vrcp.pop %v1035
        %v1056 = vmul.f32 1.0, %v1055
        %v1057 = vrcp.pop %v1036
        %v1058 = vmul.f32 1.0, %v1057
        %v1059 = vrcp.pop %v1037
        %v1060 = vmul.f32 1.0, %v1059
        %v1061 = vrcp.pop %v1038
        %v1062 = vmul.f32 1.0, %v1061
        %v1063 = vrcp.pop %v1039
        %v1064 = vmul.f32 1.0, %v1063
        %v1065 = vrcp.pop %v1040
        %v1066 = vmul.f32 1.0, %v1065
        %v1067 = vrcp.pop %v1041
        %v1068 = vmul.f32 1.0, %v1067
        %v1069 = vrcp.pop %v1042
        %v1070 = vmul.f32 1.0, %v1069
        %v1071 = vrcp.pop %v1043
        %v1072 = vmul.f32 1.0, %v1071
        %v1073 = vrcp.pop %v1044
        %v1074 = vmul.f32 1.0, %v1073
        %v1075 = vrcp.pop %v1045
        %v1076 = vmul.f32 1.0, %v1075
        %v1077 = vrcp.pop %v1046
        %v1078 = vmul.f32 1.0, %v1077
        %v1079 = vmul.f32 %v1048, %v292
        %v1080 = vmul.f32 %v1050, %v293
        %v1081 = vmul.f32 %v1052, %v294
        %v1082 = vmul.f32 %v1054, %v295
        %v1083 = vmul.f32 %v1056, %v296
        %v1084 = vmul.f32 %v1058, %v297
        %v1085 = vmul.f32 %v1060, %v298
        %v1086 = vmul.f32 %v1062, %v299
        %v1087 = vmul.f32 %v1064, %v300
        %v1088 = vmul.f32 %v1066, %v301
        %v1089 = vmul.f32 %v1068, %v302
        %v1090 = vmul.f32 %v1070, %v303
        %v1091 = vmul.f32 %v1072, %v304
        %v1092 = vmul.f32 %v1074, %v305
        %v1093 = vmul.f32 %v1076, %v306
        %v1094 = vmul.f32 %v1078, %v307
        %v1095 = vadd.f32 %v232, %v1079
        %v1096 = vadd.f32 %v233, %v1080
        %v1097 = vadd.f32 %v234, %v1081
        %v1098 = vadd.f32 %v235, %v1082
        %v1099 = vadd.f32 %v236, %v1083
        %v1100 = vadd.f32 %v237, %v1084
        %v1101 = vadd.f32 %v238, %v1085
        %v1102 = vadd.f32 %v239, %v1086
        %v1103 = vadd.f32 %v240, %v1087
        %v1104 = vadd.f32 %v241, %v1088
        %v1105 = vadd.f32 %v242, %v1089
        %v1106 = vadd.f32 %v243, %v1090
        %v1107 = vadd.f32 %v244, %v1091
        %v1108 = vadd.f32 %v245, %v1092
        %v1109 = vadd.f32 %v246, %v1093
        %v1110 = vadd.f32 %v247, %v1094
        %1111 = vset.pattern.permute.xlu0 2
        %1112 = vperm.xlu0 %1111, %v284
        %v1113 = vpop.permute.xlu0 %1112
        %1115 = vset.pattern.permute.xlu0 2
        %1116 = vperm.xlu0 %1115, %v285
        %v1117 = vpop.permute.xlu0 %1116
        %1119 = vset.pattern.permute.xlu0 2
        %1120 = vperm.xlu0 %1119, %v286
        %v1121 = vpop.permute.xlu0 %1120
        %1123 = vset.pattern.permute.xlu0 2
        %1124 = vperm.xlu0 %1123, %v287
        %v1125 = vpop.permute.xlu0 %1124
        %v1128 = vsel %vm344, %v256, 0
        %v1131 = vsel %vm344, %v257, 0
        %v1134 = vsel %vm344, %v258, 0
        %v1137 = vsel %vm344, %v259, 0
        %1139 = vmatprep.subr.mxu0 %v1096
        %1140 = vmatpush1.msra.mxu0 %v1095
        %1141 = vmatprep.subr.mxu0 %v1098
        %1142 = vmatpush1.msra.mxu0 %v1097
        %1143 = vmatprep.subr.mxu0 %v1100
        %1144 = vmatpush1.msra.mxu0 %v1099
        %1145 = vmatprep.subr.mxu0 %v1102
        %1146 = vmatpush1.msra.mxu0 %v1101
        %1147 = vmatprep.subr.mxu0 %v1104
        %1148 = vmatpush1.msra.mxu0 %v1103
        %1149 = vmatprep.subr.mxu0 %v1106
        %1150 = vmatpush1.msra.mxu0 %v1105
        %1151 = vmatprep.subr.mxu0 %v1108
        %1152 = vmatpush1.msra.mxu0 %v1107
        %1153 = vmatprep.subr.mxu0 %v1110
        %1154 = vmatpush1.msra.mxu0 %v1109
        %1155 = vmatprep.subr.mxu0 0.0
        %1156 = vmatpush1.msra.mxu0 0.0
        %1157 = vmatprep.subr.mxu0 0.0
        %1158 = vmatpush1.msra.mxu0 0.0
        %1159 = vmatprep.subr.mxu0 0.0
        %1160 = vmatpush1.msra.mxu0 0.0
        %1161 = vmatprep.subr.mxu0 0.0
        %1162 = vmatpush1.msra.mxu0 0.0
        %1163 = vmatprep.subr.mxu0 0.0
        %1164 = vmatpush1.msra.mxu0 0.0
        %1165 = vmatprep.subr.mxu0 0.0
        %1166 = vmatpush1.msra.mxu0 0.0
        %1167 = vmatprep.subr.mxu0 0.0
        %1168 = vmatpush1.msra.mxu0 0.0
        %1169 = vmatprep.subr.mxu0 0.0
        %1170 = vmatpush1.msra.mxu0 0.0
        %1171 = vmatprep.subr.mxu0 0.0
        %1172 = vmatpush1.msra.mxu0 0.0
        %1173 = vmatprep.subr.mxu0 0.0
        %1174 = vmatpush1.msra.mxu0 0.0
        %1175 = vmatprep.subr.mxu0 0.0
        %1176 = vmatpush1.msra.mxu0 0.0
        %1177 = vmatprep.subr.mxu0 0.0
        %1178 = vmatpush1.msra.mxu0 0.0
        %1179 = vmatprep.subr.mxu0 0.0
        %1180 = vmatpush1.msra.mxu0 0.0
        %1181 = vmatprep.subr.mxu0 0.0
        %1182 = vmatpush1.msra.mxu0 0.0
        %1183 = vmatprep.subr.mxu0 0.0
        %1184 = vmatpush1.msra.mxu0 0.0
        %1185 = vmatprep.subr.mxu0 0.0
        %1186 = vmatpush1.msra.mxu0 0.0
        %1187 = vmatprep.subr.mxu0 0.0
        %1188 = vmatpush1.msra.mxu0 0.0
        %1189 = vmatprep.subr.mxu0 0.0
        %1190 = vmatpush1.msra.mxu0 0.0
        %1191 = vmatprep.subr.mxu0 0.0
        %1192 = vmatpush1.msra.mxu0 0.0
        %1193 = vmatprep.subr.mxu0 0.0
        %1194 = vmatpush1.msra.mxu0 0.0
        %1195 = vmatprep.subr.mxu0 0.0
        %1196 = vmatpush1.msra.mxu0 0.0
        %1197 = vmatprep.subr.mxu0 0.0
        %1198 = vmatpush1.msra.mxu0 0.0
        %1199 = vmatprep.subr.mxu0 0.0
        %1200 = vmatpush1.msra.mxu0 0.0
        %1201 = vmatprep.subr.mxu0 0.0
        %1202 = vmatpush1.msra.mxu0 0.0
        %1203 = vmatprep.mubr.f32.mxu0 0.0
        %1204 = vmatmul.mubr.f32.gmra.mrb[0].mxu0 %v1128
        %v1205 = vpop.f32.mrb[0].mxu0
        %v1206 = vadd.f32 %v1113, %v1205
        %v1207 = vpop.f32.mrb[0].mxu0
        %v1208 = vadd.f32 %v1113, %v1207
        %1209 = vmatprep.mubr.f32.mxu0 0.0
        %1210 = vmatmul.mubr.f32.gmra.mrb[0].mxu0 %v1131
        %v1211 = vpop.f32.mrb[0].mxu0
        %v1212 = vadd.f32 %v1117, %v1211
        %v1213 = vpop.f32.mrb[0].mxu0
        %v1214 = vadd.f32 %v1117, %v1213
        %1215 = vmatprep.mubr.f32.mxu0 0.0
        %1216 = vmatmul.mubr.f32.gmra.mrb[0].mxu0 %v1134
        %v1217 = vpop.f32.mrb[0].mxu0
        %v1218 = vadd.f32 %v1121, %v1217
        %v1219 = vpop.f32.mrb[0].mxu0
        %v1220 = vadd.f32 %v1121, %v1219
        %1221 = vmatprep.mubr.f32.mxu0 0.0
        %1222 = vmatmul.mubr.f32.gmra.mrb[0].mxu0 %v1137
        %v1223 = vpop.f32.mrb[0].mxu0
        %v1224 = vadd.f32 %v1125, %v1223
        %v1225 = vpop.f32.mrb[0].mxu0
        %v1226 = vadd.f32 %v1125, %v1225
        %1227 = vdwg.mxu0
        %v1228 = vmax.f32 %v1206, 0.0
        %v1229 = vmax.f32 %v1208, 0.0
        %v1230 = vmax.f32 %v1212, 0.0
        %v1231 = vmax.f32 %v1214, 0.0
        %v1232 = vmax.f32 %v1218, 0.0
        %v1233 = vmax.f32 %v1220, 0.0
        %v1234 = vmax.f32 %v1224, 0.0
        %v1235 = vmax.f32 %v1226, 0.0
        %1236 = vset.pattern.permute.xlu0 4
        %1237 = vperm.xlu0 %1236, %v284
        %v1238 = vpop.permute.xlu0 %1237
        %1240 = vset.pattern.permute.xlu0 4
        %1241 = vperm.xlu0 %1240, %v285
        %v1242 = vpop.permute.xlu0 %1241
        %1244 = vset.pattern.permute.xlu0 4
        %1245 = vperm.xlu0 %1244, %v286
        %v1246 = vpop.permute.xlu0 %1245
        %1248 = vset.pattern.permute.xlu0 4
        %1249 = vperm.xlu0 %1248, %v287
        %v1250 = vpop.permute.xlu0 %1249
        %1252 = vset.pattern.permute.xlu0 4
        %1253 = vperm.xlu0 %1252, %v288
        %v1254 = vpop.permute.xlu0 %1253
        %1256 = vset.pattern.permute.xlu0 4
        %1257 = vperm.xlu0 %1256, %v289
        %v1258 = vpop.permute.xlu0 %1257
        %1260 = vset.pattern.permute.xlu0 4
        %1261 = vperm.xlu0 %1260, %v290
        %v1262 = vpop.permute.xlu0 %1261
        %1264 = vset.pattern.permute.xlu0 4
        %1265 = vperm.xlu0 %1264, %v291
        %v1266 = vpop.permute.xlu0 %1265
        %v1269 = vsel %vm490, %v268, 0
        %v1272 = vsel %vm490, %v269, 0
        %v1275 = vsel %vm490, %v270, 0
        %v1278 = vsel %vm490, %v271, 0
        %v1281 = vsel %vm490, %v272, 0
        %v1284 = vsel %vm490, %v273, 0
        %v1287 = vsel %vm490, %v274, 0
        %v1290 = vsel %vm490, %v275, 0
        %1292 = vmatprep.subr.mxu0 %v1229
        %1293 = vmatpush1.msra.mxu0 %v1228
        %1294 = vmatprep.subr.mxu0 %v1231
        %1295 = vmatpush1.msra.mxu0 %v1230
        %1296 = vmatprep.subr.mxu0 %v1233
        %1297 = vmatpush1.msra.mxu0 %v1232
        %1298 = vmatprep.subr.mxu0 %v1235
        %1299 = vmatpush1.msra.mxu0 %v1234
        %1300 = vmatprep.subr.mxu0 0.0
        %1301 = vmatpush1.msra.mxu0 0.0
        %1302 = vmatprep.subr.mxu0 0.0
        %1303 = vmatpush1.msra.mxu0 0.0
        %1304 = vmatprep.subr.mxu0 0.0
        %1305 = vmatpush1.msra.mxu0 0.0
        %1306 = vmatprep.subr.mxu0 0.0
        %1307 = vmatpush1.msra.mxu0 0.0
        %1308 = vmatprep.subr.mxu0 0.0
        %1309 = vmatpush1.msra.mxu0 0.0
        %1310 = vmatprep.subr.mxu0 0.0
        %1311 = vmatpush1.msra.mxu0 0.0
        %1312 = vmatprep.subr.mxu0 0.0
        %1313 = vmatpush1.msra.mxu0 0.0
        %1314 = vmatprep.subr.mxu0 0.0
        %1315 = vmatpush1.msra.mxu0 0.0
        %1316 = vmatprep.subr.mxu0 0.0
        %1317 = vmatpush1.msra.mxu0 0.0
        %1318 = vmatprep.subr.mxu0 0.0
        %1319 = vmatpush1.msra.mxu0 0.0
        %1320 = vmatprep.subr.mxu0 0.0
        %1321 = vmatpush1.msra.mxu0 0.0
        %1322 = vmatprep.subr.mxu0 0.0
        %1323 = vmatpush1.msra.mxu0 0.0
        %1324 = vmatprep.subr.mxu0 0.0
        %1325 = vmatpush1.msra.mxu0 0.0
        %1326 = vmatprep.subr.mxu0 0.0
        %1327 = vmatpush1.msra.mxu0 0.0
        %1328 = vmatprep.subr.mxu0 0.0
        %1329 = vmatpush1.msra.mxu0 0.0
        %1330 = vmatprep.subr.mxu0 0.0
        %1331 = vmatpush1.msra.mxu0 0.0
        %1332 = vmatprep.subr.mxu0 0.0
        %1333 = vmatpush1.msra.mxu0 0.0
        %1334 = vmatprep.subr.mxu0 0.0
        %1335 = vmatpush1.msra.mxu0 0.0
        %1336 = vmatprep.subr.mxu0 0.0
        %1337 = vmatpush1.msra.mxu0 0.0
        %1338 = vmatprep.subr.mxu0 0.0
        %1339 = vmatpush1.msra.mxu0 0.0
        %1340 = vmatprep.subr.mxu0 0.0
        %1341 = vmatpush1.msra.mxu0 0.0
        %1342 = vmatprep.subr.mxu0 0.0
        %1343 = vmatpush1.msra.mxu0 0.0
        %1344 = vmatprep.subr.mxu0 0.0
        %1345 = vmatpush1.msra.mxu0 0.0
        %1346 = vmatprep.subr.mxu0 0.0
        %1347 = vmatpush1.msra.mxu0 0.0
        %1348 = vmatprep.subr.mxu0 0.0
        %1349 = vmatpush1.msra.mxu0 0.0
        %1350 = vmatprep.subr.mxu0 0.0
        %1351 = vmatpush1.msra.mxu0 0.0
        %1352 = vmatprep.subr.mxu0 0.0
        %1353 = vmatpush1.msra.mxu0 0.0
        %1354 = vmatprep.subr.mxu0 0.0
        %1355 = vmatpush1.msra.mxu0 0.0
        %1356 = vmatprep.mubr.f32.mxu0 0.0
        %1357 = vmatmul.mubr.f32.gmra.mrb[0].mxu0 %v1269
        %v1358 = vpop.f32.mrb[0].mxu0
        %v1359 = vadd.f32 %v1238, %v1358
        %v1360 = vpop.f32.mrb[0].mxu0
        %v1361 = vadd.f32 %v1238, %v1360
        %1362 = vmatprep.mubr.f32.mxu0 0.0
        %1363 = vmatmul.mubr.f32.gmra.mrb[0].mxu0 %v1272
        %v1364 = vpop.f32.mrb[0].mxu0
        %v1365 = vadd.f32 %v1242, %v1364
        %v1366 = vpop.f32.mrb[0].mxu0
        %v1367 = vadd.f32 %v1242, %v1366
        %1368 = vmatprep.mubr.f32.mxu0 0.0
        %1369 = vmatmul.mubr.f32.gmra.mrb[0].mxu0 %v1275
        %v1370 = vpop.f32.mrb[0].mxu0
        %v1371 = vadd.f32 %v1246, %v1370
        %v1372 = vpop.f32.mrb[0].mxu0
        %v1373 = vadd.f32 %v1246, %v1372
        %1374 = vmatprep.mubr.f32.mxu0 0.0
        %1375 = vmatmul.mubr.f32.gmra.mrb[0].mxu0 %v1278
        %v1376 = vpop.f32.mrb[0].mxu0
        %v1377 = vadd.f32 %v1250, %v1376
        %v1378 = vpop.f32.mrb[0].mxu0
        %v1379 = vadd.f32 %v1250, %v1378
        %1380 = vmatprep.mubr.f32.mxu0 0.0
        %1381 = vmatmul.mubr.f32.gmra.mrb[0].mxu0 %v1281
        %v1382 = vpop.f32.mrb[0].mxu0
        %v1383 = vadd.f32 %v1254, %v1382
        %v1384 = vpop.f32.mrb[0].mxu0
        %v1385 = vadd.f32 %v1254, %v1384
        %1386 = vmatprep.mubr.f32.mxu0 0.0
        %1387 = vmatmul.mubr.f32.gmra.mrb[0].mxu0 %v1284
        %v1388 = vpop.f32.mrb[0].mxu0
        %v1389 = vadd.f32 %v1258, %v1388
        %v1390 = vpop.f32.mrb[0].mxu0
        %v1391 = vadd.f32 %v1258, %v1390
        %1392 = vmatprep.mubr.f32.mxu0 0.0
        %1393 = vmatmul.mubr.f32.gmra.mrb[0].mxu0 %v1287
        %v1394 = vpop.f32.mrb[0].mxu0
        %v1395 = vadd.f32 %v1262, %v1394
        %v1396 = vpop.f32.mrb[0].mxu0
        %v1397 = vadd.f32 %v1262, %v1396
        %1398 = vmatprep.mubr.f32.mxu0 0.0
        %1399 = vmatmul.mubr.f32.gmra.mrb[0].mxu0 %v1290
        %v1400 = vpop.f32.mrb[0].mxu0
        %v1401 = vadd.f32 %v1266, %v1400
        %v1402 = vpop.f32.mrb[0].mxu0
        %v1403 = vadd.f32 %v1266, %v1402
        %1404 = vdwg.mxu0
        %v1405 = vadd.f32 %v1095, %v1096
        %1406 = vadd.xlane.f32.xlu0 %v1405
        %v1407 = vpop.xlane.xlu0 %1406
        %v1408 = vadd.f32 %v1097, %v1098
        %1409 = vadd.xlane.f32.xlu0 %v1408
        %v1410 = vpop.xlane.xlu0 %1409
        %v1411 = vadd.f32 %v1099, %v1100
        %1412 = vadd.xlane.f32.xlu0 %v1411
        %v1413 = vpop.xlane.xlu0 %1412
        %v1414 = vadd.f32 %v1101, %v1102
        %1415 = vadd.xlane.f32.xlu0 %v1414
        %v1416 = vpop.xlane.xlu0 %1415
        %v1417 = vadd.f32 %v1103, %v1104
        %1418 = vadd.xlane.f32.xlu0 %v1417
        %v1419 = vpop.xlane.xlu0 %1418
        %v1420 = vadd.f32 %v1105, %v1106
        %1421 = vadd.xlane.f32.xlu0 %v1420
        %v1422 = vpop.xlane.xlu0 %1421
        %v1423 = vadd.f32 %v1107, %v1108
        %1424 = vadd.xlane.f32.xlu0 %v1423
        %v1425 = vpop.xlane.xlu0 %1424
        %v1426 = vadd.f32 %v1109, %v1110
        %1427 = vadd.xlane.f32.xlu0 %v1426
        %v1428 = vpop.xlane.xlu0 %1427
        %v1429 = vmul.f32 %v1407, %v652
        %v1430 = vmul.f32 %v1410, %v652
        %v1431 = vmul.f32 %v1413, %v652
        %v1432 = vmul.f32 %v1416, %v652
        %v1433 = vmul.f32 %v1419, %v652
        %v1434 = vmul.f32 %v1422, %v652
        %v1435 = vmul.f32 %v1425, %v652
        %v1436 = vmul.f32 %v1428, %v652
        %1437 = vmatprep.subr.mxu0 0.0
        %1438 = vmatpush1.msra.mxu0 %v1429
        %1439 = vmatprep.subr.mxu0 0.0
        %1440 = vmatpush1.msra.mxu0 %v1430
        %1441 = vmatprep.subr.mxu0 0.0
        %1442 = vmatpush1.msra.mxu0 %v1431
        %1443 = vmatprep.subr.mxu0 0.0
        %1444 = vmatpush1.msra.mxu0 %v1432
        %1445 = vmatprep.subr.mxu0 0.0
        %1446 = vmatpush1.msra.mxu0 %v1433
        %1447 = vmatprep.subr.mxu0 0.0
        %1448 = vmatpush1.msra.mxu0 %v1434
        %1449 = vmatprep.subr.mxu0 0.0
        %1450 = vmatpush1.msra.mxu0 %v1435
        %1451 = vmatprep.subr.mxu0 0.0
        %1452 = vmatpush1.msra.mxu0 %v1436
        %1453 = vmatprep.subr.mxu0 0.0
        %1454 = vmatpush1.msra.mxu0 0.0
        %1455 = vmatprep.subr.mxu0 0.0
        %1456 = vmatpush1.msra.mxu0 0.0
        %1457 = vmatprep.subr.mxu0 0.0
        %1458 = vmatpush1.msra.mxu0 0.0
        %1459 = vmatprep.subr.mxu0 0.0
        %1460 = vmatpush1.msra.mxu0 0.0
        %1461 = vmatprep.subr.mxu0 0.0
        %1462 = vmatpush1.msra.mxu0 0.0
        %1463 = vmatprep.subr.mxu0 0.0
        %1464 = vmatpush1.msra.mxu0 0.0
        %1465 = vmatprep.subr.mxu0 0.0
        %1466 = vmatpush1.msra.mxu0 0.0
        %1467 = vmatprep.subr.mxu0 0.0
        %1468 = vmatpush1.msra.mxu0 0.0
        %1469 = vmatprep.subr.mxu0 0.0
        %1470 = vmatpush1.msra.mxu0 0.0
        %1471 = vmatprep.subr.mxu0 0.0
        %1472 = vmatpush1.msra.mxu0 0.0
        %1473 = vmatprep.subr.mxu0 0.0
        %1474 = vmatpush1.msra.mxu0 0.0
        %1475 = vmatprep.subr.mxu0 0.0
        %1476 = vmatpush1.msra.mxu0 0.0
        %1477 = vmatprep.subr.mxu0 0.0
        %1478 = vmatpush1.msra.mxu0 0.0
        %1479 = vmatprep.subr.mxu0 0.0
        %1480 = vmatpush1.msra.mxu0 0.0
        %1481 = vmatprep.subr.mxu0 0.0
        %1482 = vmatpush1.msra.mxu0 0.0
        %1483 = vmatprep.subr.mxu0 0.0
        %1484 = vmatpush1.msra.mxu0 0.0
        %1485 = vmatprep.subr.mxu0 0.0
        %1486 = vmatpush1.msra.mxu0 0.0
        %1487 = vmatprep.subr.mxu0 0.0
        %1488 = vmatpush1.msra.mxu0 0.0
        %1489 = vmatprep.subr.mxu0 0.0
        %1490 = vmatpush1.msra.mxu0 0.0
        %1491 = vmatprep.subr.mxu0 0.0
        %1492 = vmatpush1.msra.mxu0 0.0
        %1493 = vmatprep.subr.mxu0 0.0
        %1494 = vmatpush1.msra.mxu0 0.0
        %1495 = vmatprep.subr.mxu0 0.0
        %1496 = vmatpush1.msra.mxu0 0.0
        %1497 = vmatprep.subr.mxu0 0.0
        %1498 = vmatpush1.msra.mxu0 0.0
        %1499 = vmatprep.subr.mxu0 0.0
        %1500 = vmatpush1.msra.mxu0 0.0
        %1501 = vmatprep.mubr.f32.mxu0 0.0
        %1502 = vmatmul.mubr.f32.gmra.mrb[0].mxu0 %v674
        %v1503 = vpop.f32.mrb[0].mxu0
        %v1504 = vadd.f32 %v662, %v1503
        %v1505 = vpop.f32.mrb[0].mxu0
        %1506 = vmatprep.mubr.f32.mxu0 0.0
        %1507 = vmatmul.mubr.f32.gmra.mrb[0].mxu0 %v677
        %v1508 = vpop.f32.mrb[0].mxu0
        %v1509 = vadd.f32 %v664, %v1508
        %v1510 = vpop.f32.mrb[0].mxu0
        %1511 = vmatprep.mubr.f32.mxu0 0.0
        %1512 = vmatmul.mubr.f32.gmra.mrb[0].mxu0 %v680
        %v1513 = vpop.f32.mrb[0].mxu0
        %v1514 = vadd.f32 %v666, %v1513
        %v1515 = vpop.f32.mrb[0].mxu0
        %1516 = vmatprep.mubr.f32.mxu0 0.0
        %1517 = vmatmul.mubr.f32.gmra.mrb[0].mxu0 %v683
        %v1518 = vpop.f32.mrb[0].mxu0
        %v1519 = vadd.f32 %v668, %v1518
        %v1520 = vpop.f32.mrb[0].mxu0
        %1521 = vdwg.mxu0
        %v1522 = vmax.f32 %v1504, 0.0
        %v1523 = vmax.f32 %v1509, 0.0
        %v1524 = vmax.f32 %v1514, 0.0
        %v1525 = vmax.f32 %v1519, 0.0
        %1526 = vmatprep.subr.mxu0 0.0
        %1527 = vmatpush1.msra.mxu0 %v1522
        %1528 = vmatprep.subr.mxu0 0.0
        %1529 = vmatpush1.msra.mxu0 %v1523
        %1530 = vmatprep.subr.mxu0 0.0
        %1531 = vmatpush1.msra.mxu0 %v1524
        %1532 = vmatprep.subr.mxu0 0.0
        %1533 = vmatpush1.msra.mxu0 %v1525
        %1534 = vmatprep.subr.mxu0 0.0
        %1535 = vmatpush1.msra.mxu0 0.0
        %1536 = vmatprep.subr.mxu0 0.0
        %1537 = vmatpush1.msra.mxu0 0.0
        %1538 = vmatprep.subr.mxu0 0.0
        %1539 = vmatpush1.msra.mxu0 0.0
        %1540 = vmatprep.subr.mxu0 0.0
        %1541 = vmatpush1.msra.mxu0 0.0
        %1542 = vmatprep.subr.mxu0 0.0
        %1543 = vmatpush1.msra.mxu0 0.0
        %1544 = vmatprep.subr.mxu0 0.0
        %1545 = vmatpush1.msra.mxu0 0.0
        %1546 = vmatprep.subr.mxu0 0.0
        %1547 = vmatpush1.msra.mxu0 0.0
        %1548 = vmatprep.subr.mxu0 0.0
        %1549 = vmatpush1.msra.mxu0 0.0
        %1550 = vmatprep.subr.mxu0 0.0
        %1551 = vmatpush1.msra.mxu0 0.0
        %1552 = vmatprep.subr.mxu0 0.0
        %1553 = vmatpush1.msra.mxu0 0.0
        %1554 = vmatprep.subr.mxu0 0.0
        %1555 = vmatpush1.msra.mxu0 0.0
        %1556 = vmatprep.subr.mxu0 0.0
        %1557 = vmatpush1.msra.mxu0 0.0
        %1558 = vmatprep.subr.mxu0 0.0
        %1559 = vmatpush1.msra.mxu0 0.0
        %1560 = vmatprep.subr.mxu0 0.0
        %1561 = vmatpush1.msra.mxu0 0.0
        %1562 = vmatprep.subr.mxu0 0.0
        %1563 = vmatpush1.msra.mxu0 0.0
        %1564 = vmatprep.subr.mxu0 0.0
        %1565 = vmatpush1.msra.mxu0 0.0
        %1566 = vmatprep.subr.mxu0 0.0
        %1567 = vmatpush1.msra.mxu0 0.0
        %1568 = vmatprep.subr.mxu0 0.0
        %1569 = vmatpush1.msra.mxu0 0.0
        %1570 = vmatprep.subr.mxu0 0.0
        %1571 = vmatpush1.msra.mxu0 0.0
        %1572 = vmatprep.subr.mxu0 0.0
        %1573 = vmatpush1.msra.mxu0 0.0
        %1574 = vmatprep.subr.mxu0 0.0
        %1575 = vmatpush1.msra.mxu0 0.0
        %1576 = vmatprep.subr.mxu0 0.0
        %1577 = vmatpush1.msra.mxu0 0.0
        %1578 = vmatprep.subr.mxu0 0.0
        %1579 = vmatpush1.msra.mxu0 0.0
        %1580 = vmatprep.subr.mxu0 0.0
        %1581 = vmatpush1.msra.mxu0 0.0
        %1582 = vmatprep.subr.mxu0 0.0
        %1583 = vmatpush1.msra.mxu0 0.0
        %1584 = vmatprep.subr.mxu0 0.0
        %1585 = vmatpush1.msra.mxu0 0.0
        %1586 = vmatprep.subr.mxu0 0.0
        %1587 = vmatpush1.msra.mxu0 0.0
        %1588 = vmatprep.subr.mxu0 0.0
        %1589 = vmatpush1.msra.mxu0 0.0
        %1590 = vmatprep.mubr.f32.mxu0 0.0
        %1591 = vmatmul.mubr.f32.gmra.mrb[0].mxu0 %v799
        %v1592 = vpop.f32.mrb[0].mxu0
        %v1593 = vadd.f32 %v775, %v1592
        %v1594 = vpop.f32.mrb[0].mxu0
        %1595 = vmatprep.mubr.f32.mxu0 0.0
        %1596 = vmatmul.mubr.f32.gmra.mrb[0].mxu0 %v802
        %v1597 = vpop.f32.mrb[0].mxu0
        %v1598 = vadd.f32 %v777, %v1597
        %v1599 = vpop.f32.mrb[0].mxu0
        %1600 = vmatprep.mubr.f32.mxu0 0.0
        %1601 = vmatmul.mubr.f32.gmra.mrb[0].mxu0 %v805
        %v1602 = vpop.f32.mrb[0].mxu0
        %v1603 = vadd.f32 %v779, %v1602
        %v1604 = vpop.f32.mrb[0].mxu0
        %1605 = vmatprep.mubr.f32.mxu0 0.0
        %1606 = vmatmul.mubr.f32.gmra.mrb[0].mxu0 %v808
        %v1607 = vpop.f32.mrb[0].mxu0
        %v1608 = vadd.f32 %v781, %v1607
        %v1609 = vpop.f32.mrb[0].mxu0
        %1610 = vmatprep.mubr.f32.mxu0 0.0
        %1611 = vmatmul.mubr.f32.gmra.mrb[0].mxu0 %v811
        %v1612 = vpop.f32.mrb[0].mxu0
        %v1613 = vadd.f32 %v783, %v1612
        %v1614 = vpop.f32.mrb[0].mxu0
        %1615 = vmatprep.mubr.f32.mxu0 0.0
        %1616 = vmatmul.mubr.f32.gmra.mrb[0].mxu0 %v814
        %v1617 = vpop.f32.mrb[0].mxu0
        %v1618 = vadd.f32 %v785, %v1617
        %v1619 = vpop.f32.mrb[0].mxu0
        %1620 = vmatprep.mubr.f32.mxu0 0.0
        %1621 = vmatmul.mubr.f32.gmra.mrb[0].mxu0 %v817
        %v1622 = vpop.f32.mrb[0].mxu0
        %v1623 = vadd.f32 %v787, %v1622
        %v1624 = vpop.f32.mrb[0].mxu0
        %1625 = vmatprep.mubr.f32.mxu0 0.0
        %1626 = vmatmul.mubr.f32.gmra.mrb[0].mxu0 %v820
        %v1627 = vpop.f32.mrb[0].mxu0
        %v1628 = vadd.f32 %v789, %v1627
        %v1629 = vpop.f32.mrb[0].mxu0
        %1630 = vdwg.mxu0
        %1632 = vset.pattern.permute.xlu0 0
        %1633 = vperm.xlu0 %1632, %v1593
        %v1634 = vpop.permute.xlu0 %1633
        %1637 = vset.pattern.permute.xlu0 0
        %1638 = vperm.xlu0 %1637, %v1598
        %v1639 = vpop.permute.xlu0 %1638
        %1642 = vset.pattern.permute.xlu0 0
        %1643 = vperm.xlu0 %1642, %v1603
        %v1644 = vpop.permute.xlu0 %1643
        %1647 = vset.pattern.permute.xlu0 0
        %1648 = vperm.xlu0 %1647, %v1608
        %v1649 = vpop.permute.xlu0 %1648
        %1652 = vset.pattern.permute.xlu0 0
        %1653 = vperm.xlu0 %1652, %v1613
        %v1654 = vpop.permute.xlu0 %1653
        %1657 = vset.pattern.permute.xlu0 0
        %1658 = vperm.xlu0 %1657, %v1618
        %v1659 = vpop.permute.xlu0 %1658
        %1662 = vset.pattern.permute.xlu0 0
        %1663 = vperm.xlu0 %1662, %v1623
        %v1664 = vpop.permute.xlu0 %1663
        %1667 = vset.pattern.permute.xlu0 0
        %1668 = vperm.xlu0 %1667, %v1628
        %v1669 = vpop.permute.xlu0 %1668
        %v1671 = vadd.f32 %v1359, %v1634
        %v1672 = vadd.f32 %v1361, %v1634
        %v1673 = vadd.f32 %v1365, %v1639
        %v1674 = vadd.f32 %v1367, %v1639
        %v1675 = vadd.f32 %v1371, %v1644
        %v1676 = vadd.f32 %v1373, %v1644
        %v1677 = vadd.f32 %v1377, %v1649
        %v1678 = vadd.f32 %v1379, %v1649
        %v1679 = vadd.f32 %v1383, %v1654
        %v1680 = vadd.f32 %v1385, %v1654
        %v1681 = vadd.f32 %v1389, %v1659
        %v1682 = vadd.f32 %v1391, %v1659
        %v1683 = vadd.f32 %v1395, %v1664
        %v1684 = vadd.f32 %v1397, %v1664
        %v1685 = vadd.f32 %v1401, %v1669
        %v1686 = vadd.f32 %v1403, %v1669
        %v1687 = vxor.u32 %v1671, 2147483648
        %v1688 = vxor.u32 %v1672, 2147483648
        %v1689 = vxor.u32 %v1673, 2147483648
        %v1690 = vxor.u32 %v1674, 2147483648
        %v1691 = vxor.u32 %v1675, 2147483648
        %v1692 = vxor.u32 %v1676, 2147483648
        %v1693 = vxor.u32 %v1677, 2147483648
        %v1694 = vxor.u32 %v1678, 2147483648
        %v1695 = vxor.u32 %v1679, 2147483648
        %v1696 = vxor.u32 %v1680, 2147483648
        %v1697 = vxor.u32 %v1681, 2147483648
        %v1698 = vxor.u32 %v1682, 2147483648
        %v1699 = vxor.u32 %v1683, 2147483648
        %v1700 = vxor.u32 %v1684, 2147483648
        %v1701 = vxor.u32 %v1685, 2147483648
        %v1702 = vxor.u32 %v1686, 2147483648
        %v1703 = vmul.f32 %v1687, 1.442695
        %v1704 = vpow.pop %v1703
        %v1705 = vmul.f32 %v1688, 1.442695
        %v1706 = vpow.pop %v1705
        %v1707 = vmul.f32 %v1689, 1.442695
        %v1708 = vpow.pop %v1707
        %v1709 = vmul.f32 %v1690, 1.442695
        %v1710 = vpow.pop %v1709
        %v1711 = vmul.f32 %v1691, 1.442695
        %v1712 = vpow.pop %v1711
        %v1713 = vmul.f32 %v1692, 1.442695
        %v1714 = vpow.pop %v1713
        %v1715 = vmul.f32 %v1693, 1.442695
        %v1716 = vpow.pop %v1715
        %v1717 = vmul.f32 %v1694, 1.442695
        %v1718 = vpow.pop %v1717
        %v1719 = vmul.f32 %v1695, 1.442695
        %v1720 = vpow.pop %v1719
        %v1721 = vmul.f32 %v1696, 1.442695
        %v1722 = vpow.pop %v1721
        %v1723 = vmul.f32 %v1697, 1.442695
        %v1724 = vpow.pop %v1723
        %v1725 = vmul.f32 %v1698, 1.442695
        %v1726 = vpow.pop %v1725
        %v1727 = vmul.f32 %v1699, 1.442695
        %v1728 = vpow.pop %v1727
        %v1729 = vmul.f32 %v1700, 1.442695
        %v1730 = vpow.pop %v1729
        %v1731 = vmul.f32 %v1701, 1.442695
        %v1732 = vpow.pop %v1731
        %v1733 = vmul.f32 %v1702, 1.442695
        %v1734 = vpow.pop %v1733
        %v1735 = vadd.f32 %v1704, 1.0
        %v1736 = vadd.f32 %v1706, 1.0
        %v1737 = vadd.f32 %v1708, 1.0
        %v1738 = vadd.f32 %v1710, 1.0
        %v1739 = vadd.f32 %v1712, 1.0
        %v1740 = vadd.f32 %v1714, 1.0
        %v1741 = vadd.f32 %v1716, 1.0
        %v1742 = vadd.f32 %v1718, 1.0
        %v1743 = vadd.f32 %v1720, 1.0
        %v1744 = vadd.f32 %v1722, 1.0
        %v1745 = vadd.f32 %v1724, 1.0
        %v1746 = vadd.f32 %v1726, 1.0
        %v1747 = vadd.f32 %v1728, 1.0
        %v1748 = vadd.f32 %v1730, 1.0
        %v1749 = vadd.f32 %v1732, 1.0
        %v1750 = vadd.f32 %v1734, 1.0
        %v1751 = vrcp.pop %v1735
        %v1752 = vmul.f32 1.0, %v1751
        %v1753 = vrcp.pop %v1736
        %v1754 = vmul.f32 1.0, %v1753
        %v1755 = vrcp.pop %v1737
        %v1756 = vmul.f32 1.0, %v1755
        %v1757 = vrcp.pop %v1738
        %v1758 = vmul.f32 1.0, %v1757
        %v1759 = vrcp.pop %v1739
        %v1760 = vmul.f32 1.0, %v1759
        %v1761 = vrcp.pop %v1740
        %v1762 = vmul.f32 1.0, %v1761
        %v1763 = vrcp.pop %v1741
        %v1764 = vmul.f32 1.0, %v1763
        %v1765 = vrcp.pop %v1742
        %v1766 = vmul.f32 1.0, %v1765
        %v1767 = vrcp.pop %v1743
        %v1768 = vmul.f32 1.0, %v1767
        %v1769 = vrcp.pop %v1744
        %v1770 = vmul.f32 1.0, %v1769
        %v1771 = vrcp.pop %v1745
        %v1772 = vmul.f32 1.0, %v1771
        %v1773 = vrcp.pop %v1746
        %v1774 = vmul.f32 1.0, %v1773
        %v1775 = vrcp.pop %v1747
        %v1776 = vmul.f32 1.0, %v1775
        %v1777 = vrcp.pop %v1748
        %v1778 = vmul.f32 1.0, %v1777
        %v1779 = vrcp.pop %v1749
        %v1780 = vmul.f32 1.0, %v1779
        %v1781 = vrcp.pop %v1750
        %v1782 = vmul.f32 1.0, %v1781
        %v1783 = vmul.f32 %v1752, %v292
        %v1784 = vmul.f32 %v1754, %v293
        %v1785 = vmul.f32 %v1756, %v294
        %v1786 = vmul.f32 %v1758, %v295
        %v1787 = vmul.f32 %v1760, %v296
        %v1788 = vmul.f32 %v1762, %v297
        %v1789 = vmul.f32 %v1764, %v298
        %v1790 = vmul.f32 %v1766, %v299
        %v1791 = vmul.f32 %v1768, %v300
        %v1792 = vmul.f32 %v1770, %v301
        %v1793 = vmul.f32 %v1772, %v302
        %v1794 = vmul.f32 %v1774, %v303
        %v1795 = vmul.f32 %v1776, %v304
        %v1796 = vmul.f32 %v1778, %v305
        %v1797 = vmul.f32 %v1780, %v306
        %v1798 = vmul.f32 %v1782, %v307
        %v1799 = vadd.f32 %v232, %v1783
        %v1800 = vadd.f32 %v233, %v1784
        %v1801 = vadd.f32 %v234, %v1785
        %v1802 = vadd.f32 %v235, %v1786
        %v1803 = vadd.f32 %v236, %v1787
        %v1804 = vadd.f32 %v237, %v1788
        %v1805 = vadd.f32 %v238, %v1789
        %v1806 = vadd.f32 %v239, %v1790
        %v1807 = vadd.f32 %v240, %v1791
        %v1808 = vadd.f32 %v241, %v1792
        %v1809 = vadd.f32 %v242, %v1793
        %v1810 = vadd.f32 %v243, %v1794
        %v1811 = vadd.f32 %v244, %v1795
        %v1812 = vadd.f32 %v245, %v1796
        %v1813 = vadd.f32 %v246, %v1797
        %v1814 = vadd.f32 %v247, %v1798
        %1815 = vst [vmem:[%s205] sm:$0xff] %v1799
        %1816 = vst [vmem:[%s205 + $0x8] sm:$0xff] %v1800
        %1817 = vst [vmem:[%s205 + $0x10] sm:$0xff] %v1801
        %1818 = vst [vmem:[%s205 + $0x18] sm:$0xff] %v1802
        %1819 = vst [vmem:[%s205 + $0x20] sm:$0xff] %v1803
        %1820 = vst [vmem:[%s205 + $0x28] sm:$0xff] %v1804
        %1821 = vst [vmem:[%s205 + $0x30] sm:$0xff] %v1805
        %1822 = vst [vmem:[%s205 + $0x38] sm:$0xff] %v1806
        %1823 = vst [vmem:[%s205 + $0x40] sm:$0xff] %v1807
        %1824 = vst [vmem:[%s205 + $0x48] sm:$0xff] %v1808
        %1825 = vst [vmem:[%s205 + $0x50] sm:$0xff] %v1809
        %1826 = vst [vmem:[%s205 + $0x58] sm:$0xff] %v1810
        %1827 = vst [vmem:[%s205 + $0x60] sm:$0xff] %v1811
        %1828 = vst [vmem:[%s205 + $0x68] sm:$0xff] %v1812
        %1829 = vst [vmem:[%s205 + $0x70] sm:$0xff] %v1813
        %1830 = vst [vmem:[%s205 + $0x78] sm:$0xff] %v1814
        %s1831 = sand.u32 %s120, 1
        %s1832 = scalar_lea.sflag [#allocation3], %s1831
        %s1833 = sand.u32 %s120, 1
        %s1834 = smul.addr %s1833, 128
        %s1835 = scalar_lea.vmem [#allocation2], %s1834
        // Predicated region
        $region37: #{tpu_custom_call.1} parent=35 // pred_check
          %p1836 = pneg %p130
        $region38: #{tpu_custom_call.1} parent=35 // pred_check_branch
          %1838 = sbr.rel (%p1836) target = $region40
        $region39: #{tpu_custom_call.1} parent=35 // pred_region
          %s1840 = ssub.s32 2048, 2048
          %1841 = vsyncadd %s1832, %s1840
          %s1842 = smul.addr %s18, 16
          %s1843 = smul.addr %s1842, 128
          %s1844 = scalar_lea.hbm %s4, %s1843
          %s1845 = sshll.u32 %s1835, 4
          %s1846 = int_to_ptr.vmem [resolvable:$true] %s1845
          %1851 = dma.vmem_to_hbm [thread:$0]  %s1846, 2048, %s1844, %s1832, 256, 256, 16
        $region40: #{tpu_custom_call.1} parent=35 // pred_fallthru
          _
      $region36: #{tpu_custom_call.1} parent=5 // pred_fallthru
        _
      %p1852 = scmp.le.s32.totalorder 2, %s13
      // Predicated region
      $region41: #{tpu_custom_call.1} parent=5 // pred_check
        %p1853 = pneg %p1852
      $region42: #{tpu_custom_call.1} parent=5 // pred_check_branch
        %1855 = sbr.rel (%p1853) target = $region44
      $region43: #{tpu_custom_call.1} parent=5 // pred_region
        %s1856 = ssub.s32 %s13, 2
        // Predicated region
        $region45: #{tpu_custom_call.1} parent=43 // pred_check
          %p1857 = pneg %p136
        $region46: #{tpu_custom_call.1} parent=43 // pred_check_branch
          %1859 = sbr.rel (%p1857) target = $region48
        $region47: #{tpu_custom_call.1} parent=43 // pred_region
          %s1860 = sand.u32 %s121, 1
          %s1861 = scalar_lea.sflag [#allocation3], %s1860
          %s1862 = sand.u32 %s121, 1
          %s1863 = smul.addr %s1862, 128
          %s1864 = scalar_lea.vmem [#allocation2], %s1863
          %1865 = dma.done %s1861, 2048
        $region48: #{tpu_custom_call.1} parent=43 // pred_fallthru
          _
      $region44: #{tpu_custom_call.1} parent=5 // pred_fallthru
        _
    $region6: #{tpu_custom_call.1} parent=1 // loop_footer
      %s17 = sadd.s32 1, %s13
    $region7: #{tpu_custom_call.1} parent=1 // loop_footer_branch
      %12 = sbr.rel target = $region3
    $region8: #{tpu_custom_call.1} parent=1 // loop_exit
      _
    %1866 = vsyncpa [#allocation3], 1
    %s1867 = scalar_lea.sflag [#allocation3], 1
    %1868 = vsyncpa %s1867, 1

</llo_original>
